<compile_context>
chip_gen: v7x
topology: tpu7x:2x2x1
jax: 0.10.0
libtpu: 0.0.40
codegen_flags: <defaults>
</compile_context>

<pallas_src>
import jax
import jax.numpy as jnp
from jax import lax
from jax.experimental import pallas as pl
from jax.experimental.pallas import tpu as pltpu

EPS = 1e-5


def _bn_add_relu_conv_kernel(x74_ref, x67_ref, gamma_ref, beta_ref,
                             mean_ref, var_ref, w_ref, o_ref):
    # x74_ref, x67_ref: (C, S); gamma/beta/mean/var: (C, 1); w_ref: (C_out, C)
    # o_ref: (C_out, S)
    # Fold BN in-kernel: scale = gamma * rsqrt(var + eps); shift = beta - mean*scale
    scale = gamma_ref[...] * lax.rsqrt(var_ref[...] + EPS)   # EUP rsqrt, free slot
    shift = beta_ref[...] - mean_ref[...] * scale
    y = jnp.maximum(x67_ref[...] + x74_ref[...] * scale + shift, 0.0)
    o_ref[...] = jnp.dot(w_ref[...], y,
                         preferred_element_type=jnp.float32).astype(o_ref.dtype)


def bn_add_relu_conv1x1(x74, x67, gamma, beta, running_mean, running_var,
                        weight):
    """x74, x67: (N, C, H, W) float32.  weight: (C_out, C_in, 1, 1)."""
    N, C, H, W = x74.shape
    C_out = weight.shape[0]
    S = H * W

    # Free reshapes: keep native channel-major layout.
    x74_r = x74.reshape(N, C, S)
    x67_r = x67.reshape(N, C, S)
    w2d = weight.reshape(C_out, C)          # (C_out, C_in) — matmul LHS.
    gamma_c = gamma.reshape(C, 1)
    beta_c = beta.reshape(C, 1)
    mean_c = running_mean.reshape(C, 1)
    var_c = running_var.reshape(C, 1)

    grid = (N,)
    x_spec = pl.BlockSpec((None, C, S), lambda n: (n, 0, 0))
    vec_spec = pl.BlockSpec((C, 1), lambda n: (0, 0))
    w_spec = pl.BlockSpec((C_out, C), lambda n: (0, 0))
    out_spec = pl.BlockSpec((None, C_out, S), lambda n: (n, 0, 0))

    cost = pl.CostEstimate(
        flops=2 * N * C_out * C * S,
        bytes_accessed=(2 * N * C * S + N * C_out * S + C_out * C + 4 * C) * 4,
        transcendentals=C,
    )

    out = pl.pallas_call(
        _bn_add_relu_conv_kernel,
        out_shape=jax.ShapeDtypeStruct((N, C_out, S), x74.dtype),
        grid=grid,
        in_specs=[x_spec, x_spec, vec_spec, vec_spec, vec_spec, vec_spec,
                  w_spec],
        out_specs=out_spec,
        compiler_params=pltpu.CompilerParams(
            dimension_semantics=("parallel",)),
        cost_estimate=cost,
    )(x74_r, x67_r, gamma_c, beta_c, mean_c, var_c, w2d)

    # (N, C_out, S) -> (N, C_out, H, W): free reshape, no transpose.
    return out.reshape(N, C_out, H, W)


def _reference(x74, x67, gamma, beta, running_mean, running_var, weight):
    g = gamma[None, :, None, None]
    b = beta[None, :, None, None]
    m = running_mean[None, :, None, None]
    v = running_var[None, :, None, None]
    bn = g * (x74 - m) / jnp.sqrt(v + EPS) + b
    y = jnp.maximum(x67 + bn, 0.0)
    # 1x1 conv == einsum over the channel axis
    return jnp.einsum('nchw,oc->nohw', y, weight[:, :, 0, 0])


if __name__ == "__main__":
    N, C, H, W = 1, 192, 28, 28
    key = jax.random.PRNGKey(0)
    k1, k2, k3, k4, k5, k6, k7 = jax.random.split(key, 7)

    x74 = jax.random.normal(k1, (N, C, H, W), dtype=jnp.float32)
    x67 = jax.random.normal(k2, (N, C, H, W), dtype=jnp.float32)

    # Deterministic "parameters"
    gamma = 1.0 + 0.1 * jax.random.normal(k3, (C,), dtype=jnp.float32)
    beta = 0.1 * jax.random.normal(k4, (C,), dtype=jnp.float32)
    running_mean = 0.1 * jax.random.normal(k5, (C,), dtype=jnp.float32)
    running_var = 1.0 + 0.1 * jax.random.uniform(k6, (C,), dtype=jnp.float32)
    conv_w = 0.05 * jax.random.normal(k7, (C, C, 1, 1), dtype=jnp.float32)

    out = bn_add_relu_conv1x1(x74, x67, gamma, beta,
                              running_mean, running_var, conv_w)
    out = jax.block_until_ready(out)

    ref = _reference(x74, x67, gamma, beta, running_mean, running_var, conv_w)
    assert out.shape == (N, C, H, W)
    assert jnp.allclose(out, ref, atol=1e-3, rtol=1e-3), "mismatch vs reference"

    print("KERNEL_OK")
</pallas_src>

<mosaic_0001>
module attributes {stable_mosaic.version = 11 : i64} {
  func.func @_bn_add_relu_conv_kernel(%arg0: i32, %arg1: memref<1x192x784xf32, #tpu.memory_space<vmem>>, %arg2: memref<1x192x784xf32, #tpu.memory_space<vmem>>, %arg3: memref<192x1xf32, #tpu.memory_space<vmem>>, %arg4: memref<192x1xf32, #tpu.memory_space<vmem>>, %arg5: memref<192x1xf32, #tpu.memory_space<vmem>>, %arg6: memref<192x1xf32, #tpu.memory_space<vmem>>, %arg7: memref<192x192xf32, #tpu.memory_space<vmem>>, %arg8: memref<1x192x784xf32, #tpu.memory_space<vmem>>) attributes {dimension_semantics = [#tpu.dimension_semantics<parallel>], iteration_bounds = array<i64: 1>, scalar_prefetch = 0 : i64, scratch_operands = 0 : i64, tpu.core_type = #tpu.core_type<tc>, window_params = [{transform_indices = @transform_0, window_bounds = array<i64: 1, 192, 784>}, {transform_indices = @transform_1, window_bounds = array<i64: 1, 192, 784>}, {pipeline_mode = #tpu.pipeline_mode<synchronous>, transform_indices = @transform_2, window_bounds = array<i64: 192, 1>}, {pipeline_mode = #tpu.pipeline_mode<synchronous>, transform_indices = @transform_3, window_bounds = array<i64: 192, 1>}, {pipeline_mode = #tpu.pipeline_mode<synchronous>, transform_indices = @transform_4, window_bounds = array<i64: 192, 1>}, {pipeline_mode = #tpu.pipeline_mode<synchronous>, transform_indices = @transform_5, window_bounds = array<i64: 192, 1>}, {pipeline_mode = #tpu.pipeline_mode<synchronous>, transform_indices = @transform_6, window_bounds = array<i64: 192, 192>}, {transform_indices = @transform_7, window_bounds = array<i64: 1, 192, 784>}]} {
    %c0 = arith.constant 0 : index
    %c0_0 = arith.constant 0 : index
    %0 = vector.load %arg3[%c0, %c0_0] : memref<192x1xf32, #tpu.memory_space<vmem>>, vector<192x1xf32>
    %c0_1 = arith.constant 0 : index
    %c0_2 = arith.constant 0 : index
    %1 = vector.load %arg6[%c0_1, %c0_2] : memref<192x1xf32, #tpu.memory_space<vmem>>, vector<192x1xf32>
    %cst = arith.constant 9.99999974E-6 : f32
    %2 = vector.broadcast %cst : f32 to vector<192x1xf32>
    %3 = arith.addf %1, %2 : vector<192x1xf32>
    %4 = math.rsqrt %3 : vector<192x1xf32>
    %5 = arith.mulf %0, %4 : vector<192x1xf32>
    %c0_3 = arith.constant 0 : index
    %c0_4 = arith.constant 0 : index
    %6 = vector.load %arg4[%c0_3, %c0_4] : memref<192x1xf32, #tpu.memory_space<vmem>>, vector<192x1xf32>
    %c0_5 = arith.constant 0 : index
    %c0_6 = arith.constant 0 : index
    %7 = vector.load %arg5[%c0_5, %c0_6] : memref<192x1xf32, #tpu.memory_space<vmem>>, vector<192x1xf32>
    %8 = arith.mulf %7, %5 : vector<192x1xf32>
    %9 = arith.subf %6, %8 : vector<192x1xf32>
    %c0_7 = arith.constant 0 : index
    %c0_8 = arith.constant 0 : index
    %c0_9 = arith.constant 0 : index
    %10 = vector.load %arg2[%c0_7, %c0_8, %c0_9] : memref<1x192x784xf32, #tpu.memory_space<vmem>>, vector<1x192x784xf32>
    %11 = vector.shape_cast %10 : vector<1x192x784xf32> to vector<192x784xf32>
    %c0_10 = arith.constant 0 : index
    %c0_11 = arith.constant 0 : index
    %c0_12 = arith.constant 0 : index
    %12 = vector.load %arg1[%c0_10, %c0_11, %c0_12] : memref<1x192x784xf32, #tpu.memory_space<vmem>>, vector<1x192x784xf32>
    %13 = vector.shape_cast %12 : vector<1x192x784xf32> to vector<192x784xf32>
    %14 = vector.broadcast %5 : vector<192x1xf32> to vector<192x784xf32>
    %15 = arith.mulf %13, %14 : vector<192x784xf32>
    %16 = arith.addf %11, %15 : vector<192x784xf32>
    %17 = vector.broadcast %9 : vector<192x1xf32> to vector<192x784xf32>
    %18 = arith.addf %16, %17 : vector<192x784xf32>
    %cst_13 = arith.constant 0.000000e+00 : f32
    %19 = vector.broadcast %cst_13 : f32 to vector<192x784xf32>
    %20 = arith.maximumf %18, %19 : vector<192x784xf32>
    %c0_14 = arith.constant 0 : index
    %c0_15 = arith.constant 0 : index
    %21 = vector.load %arg7[%c0_14, %c0_15] : memref<192x192xf32, #tpu.memory_space<vmem>>, vector<192x192xf32>
    %cst_16 = arith.constant dense<0.000000e+00> : vector<192x784xf32>
    %22 = tpu.matmul %21, %20, %cst_16 {dimension_numbers = #tpu.dot_dimension_numbers<[1], [0], [0], [1], [0, 0, 1, 1], [], []>} : vector<192x192xf32>, vector<192x784xf32>, vector<192x784xf32> -> vector<192x784xf32>
    %c0_17 = arith.constant 0 : index
    %c0_18 = arith.constant 0 : index
    %c0_19 = arith.constant 0 : index
    %23 = vector.load %arg8[%c0_17, %c0_18, %c0_19] : memref<1x192x784xf32, #tpu.memory_space<vmem>>, vector<1x192x784xf32>
    %24 = vector.shape_cast %23 : vector<1x192x784xf32> to vector<192x784xf32>
    %25 = vector.shape_cast %22 : vector<192x784xf32> to vector<1x192x784xf32>
    tpu.vector_store %arg8[%c0_17, %c0_18, %c0_19], %25 {strides = array<i32>} : memref<1x192x784xf32, #tpu.memory_space<vmem>>, vector<1x192x784xf32>,
    return
  }
  func.func @transform_0(%arg0: i32) -> (i32, i32, i32) {
    %c0_i32 = arith.constant 0 : i32
    %c0_i32_0 = arith.constant 0 : i32
    %c0_i32_1 = arith.constant 0 : i32
    return %arg0, %c0_i32, %c0_i32_0 : i32, i32, i32
  }
  func.func @transform_1(%arg0: i32) -> (i32, i32, i32) {
    %c0_i32 = arith.constant 0 : i32
    %c0_i32_0 = arith.constant 0 : i32
    %c0_i32_1 = arith.constant 0 : i32
    return %arg0, %c0_i32, %c0_i32_0 : i32, i32, i32
  }
  func.func @transform_2(%arg0: i32) -> (i32, i32) {
    %c0_i32 = arith.constant 0 : i32
    %c0_i32_0 = arith.constant 0 : i32
    %c0_i32_1 = arith.constant 0 : i32
    return %c0_i32, %c0_i32_0 : i32, i32
  }
  func.func @transform_3(%arg0: i32) -> (i32, i32) {
    %c0_i32 = arith.constant 0 : i32
    %c0_i32_0 = arith.constant 0 : i32
    %c0_i32_1 = arith.constant 0 : i32
    return %c0_i32, %c0_i32_0 : i32, i32
  }
  func.func @transform_4(%arg0: i32) -> (i32, i32) {
    %c0_i32 = arith.constant 0 : i32
    %c0_i32_0 = arith.constant 0 : i32
    %c0_i32_1 = arith.constant 0 : i32
    return %c0_i32, %c0_i32_0 : i32, i32
  }
  func.func @transform_5(%arg0: i32) -> (i32, i32) {
    %c0_i32 = arith.constant 0 : i32
    %c0_i32_0 = arith.constant 0 : i32
    %c0_i32_1 = arith.constant 0 : i32
    return %c0_i32, %c0_i32_0 : i32, i32
  }
  func.func @transform_6(%arg0: i32) -> (i32, i32) {
    %c0_i32 = arith.constant 0 : i32
    %c0_i32_0 = arith.constant 0 : i32
    %c0_i32_1 = arith.constant 0 : i32
    return %c0_i32, %c0_i32_0 : i32, i32
  }
  func.func @transform_7(%arg0: i32) -> (i32, i32, i32) {
    %c0_i32 = arith.constant 0 : i32
    %c0_i32_0 = arith.constant 0 : i32
    %c0_i32_1 = arith.constant 0 : i32
    return %arg0, %c0_i32, %c0_i32_0 : i32, i32, i32
  }
}

</mosaic_0001>

<llo_original>
// kernel: tpu_custom_call.1
$region0: #{tpu_custom_call.1}
  #allocation0 [shape = 'u32[]', space=smem, size = 0x4, offset = 0x4, fixed_abs, tag = 'smem constant byte address 0x4 - core index']
  #allocation1 [shape = 'u32[144,128]{1,0:T(1,128)}', space=vmem, size = 0x12000, scoped, tag = 'internal scratch']
  %s0 = inlined_call_operand.hbm [shape: f32[1,192,784], index: 0, kind: input, shape index: {}]
  %s1 = inlined_call_operand.hbm [shape: f32[1,192,784], index: 1, kind: input, shape index: {}]
  %s2 = inlined_call_operand.vmem [shape: f32[192,1], index: 2, kind: input, shape index: {}]
  %s3 = inlined_call_operand.vmem [shape: f32[192,1], index: 3, kind: input, shape index: {}]
  %s4 = inlined_call_operand.vmem [shape: f32[192,1], index: 4, kind: input, shape index: {}]
  %s5 = inlined_call_operand.vmem [shape: f32[192,1], index: 5, kind: input, shape index: {}]
  %s6 = inlined_call_operand.vmem [shape: f32[192,192], index: 6, kind: input, shape index: {}]
  %s7 = inlined_call_operand.hbm [shape: f32[1,192,784], index: 7, kind: output, shape index: {}]
  %s8 = sld [smem:[#allocation0]]
  $region46: #{tpu_custom_call.1} parent=0
    _
  %s10 = ssub.s32 1, %s8
  %s11 = scalar_select 0, %s10, %s8
  $region1: #{tpu_custom_call.1} parent=0
    #allocation2 [shape = 'u8[688128]{0}', space=vmem, size = 0xa8000, scoped, tag = 'input window, operand 0, single buffered']
    #allocation3 [shape = 's32[1]{0}', space=sflag, size = 0x4, scoped, tag = 'scoped memory for tpu_custom_call.1']
    #allocation4 [shape = 's32[1]{0}', space=sflag, size = 0x4, scoped, tag = 'scoped memory for tpu_custom_call.1']
    #allocation5 [shape = 'u8[688128]{0}', space=vmem, size = 0xa8000, scoped, tag = 'input window, operand 1, single buffered']
    #allocation6 [shape = 's32[1]{0}', space=sflag, size = 0x4, scoped, tag = 'scoped memory for tpu_custom_call.1']
    #allocation7 [shape = 'u8[688128]{0}', space=vmem, size = 0xa8000, scoped, tag = 'output window, operand 0, single buffered']
    %12 = vsyncpa [#allocation3], 0
    %13 = vsyncpa [#allocation6], 0
    %14 = vsyncpa [#allocation4], 0
    // Predicated region
    $region2: #{tpu_custom_call.1} parent=1 // pred_check
      _
    $region3: #{tpu_custom_call.1} parent=1 // pred_check_branch
      %16 = sbr.rel (0) target = $region5
    $region4: #{tpu_custom_call.1} parent=1 // pred_region
      %s18 = ssub.s32 21504, 21504
      %19 = vsyncadd [#allocation3], %s18
      %s20 = sshll.u32 [#allocation2], 4
      %s21 = int_to_ptr.vmem [resolvable:$true] %s20
      %26 = dma.hbm_to_vmem [thread:$0]  %s0, 21504, %s21, [#allocation3], 896, 896, 56
    $region5: #{tpu_custom_call.1} parent=1 // pred_fallthru
      _
    // Predicated region
    $region6: #{tpu_custom_call.1} parent=1 // pred_check
      _
    $region7: #{tpu_custom_call.1} parent=1 // pred_check_branch
      %28 = sbr.rel (0) target = $region9
    $region8: #{tpu_custom_call.1} parent=1 // pred_region
      %s30 = ssub.s32 21504, 21504
      %31 = vsyncadd [#allocation6], %s30
      %s32 = sshll.u32 [#allocation5], 4
      %s33 = int_to_ptr.vmem [resolvable:$true] %s32
      %38 = dma.hbm_to_vmem [thread:$0]  %s1, 21504, %s33, [#allocation6], 896, 896, 56
    $region9: #{tpu_custom_call.1} parent=1 // pred_fallthru
      _
    // Predicated region
    $region10: #{tpu_custom_call.1} parent=1 // pred_check
      _
    $region11: #{tpu_custom_call.1} parent=1 // pred_check_branch
      %40 = sbr.rel (0) target = $region13
    $region12: #{tpu_custom_call.1} parent=1 // pred_region
      _
    $region13: #{tpu_custom_call.1} parent=1 // pred_fallthru
      _
    // Predicated region
    $region14: #{tpu_custom_call.1} parent=1 // pred_check
      _
    $region15: #{tpu_custom_call.1} parent=1 // pred_check_branch
      %42 = sbr.rel (0) target = $region17
    $region16: #{tpu_custom_call.1} parent=1 // pred_region
      _
    $region17: #{tpu_custom_call.1} parent=1 // pred_fallthru
      _
    // Predicated region
    $region18: #{tpu_custom_call.1} parent=1 // pred_check
      _
    $region19: #{tpu_custom_call.1} parent=1 // pred_check_branch
      %44 = sbr.rel (0) target = $region21
    $region20: #{tpu_custom_call.1} parent=1 // pred_region
      _
    $region21: #{tpu_custom_call.1} parent=1 // pred_fallthru
      _
    // Predicated region
    $region22: #{tpu_custom_call.1} parent=1 // pred_check
      _
    $region23: #{tpu_custom_call.1} parent=1 // pred_check_branch
      %46 = sbr.rel (0) target = $region25
    $region24: #{tpu_custom_call.1} parent=1 // pred_region
      _
    $region25: #{tpu_custom_call.1} parent=1 // pred_fallthru
      _
    // Predicated region
    $region26: #{tpu_custom_call.1} parent=1 // pred_check
      _
    $region27: #{tpu_custom_call.1} parent=1 // pred_check_branch
      %48 = sbr.rel (0) target = $region29
    $region28: #{tpu_custom_call.1} parent=1 // pred_region
      _
    $region29: #{tpu_custom_call.1} parent=1 // pred_fallthru
      _
    // Predicated region
    $region30: #{tpu_custom_call.1} parent=1 // pred_check
      _
    $region31: #{tpu_custom_call.1} parent=1 // pred_check_branch
      %50 = sbr.rel (0) target = $region33
    $region32: #{tpu_custom_call.1} parent=1 // pred_region
      %51 = dma.done [#allocation3], 21504
    $region33: #{tpu_custom_call.1} parent=1 // pred_fallthru
      _
    // Predicated region
    $region34: #{tpu_custom_call.1} parent=1 // pred_check
      _
    $region35: #{tpu_custom_call.1} parent=1 // pred_check_branch
      %53 = sbr.rel (0) target = $region37
    $region36: #{tpu_custom_call.1} parent=1 // pred_region
      %54 = dma.done [#allocation6], 21504
    $region37: #{tpu_custom_call.1} parent=1 // pred_fallthru
      _
    %v55 = vld [vmem:[%s2] sm:$0xff]
    %v56 = vld [vmem:[%s2 + $0x8] sm:$0xff]
    %v57 = vld [vmem:[%s2 + $0x10] sm:$0xff]
    %v58 = vld [vmem:[%s2 + $0x18] sm:$0xff]
    %v59 = vld [vmem:[%s2 + $0x20] sm:$0xff]
    %v60 = vld [vmem:[%s2 + $0x28] sm:$0xff]
    %v61 = vld [vmem:[%s2 + $0x30] sm:$0xff]
    %v62 = vld [vmem:[%s2 + $0x38] sm:$0xff]
    %v63 = vld [vmem:[%s2 + $0x40] sm:$0xff]
    %v64 = vld [vmem:[%s2 + $0x48] sm:$0xff]
    %v65 = vld [vmem:[%s2 + $0x50] sm:$0xff]
    %v66 = vld [vmem:[%s2 + $0x58] sm:$0xff]
    %v67 = vld [vmem:[%s2 + $0x60] sm:$0xff]
    %v68 = vld [vmem:[%s2 + $0x68] sm:$0xff]
    %v69 = vld [vmem:[%s2 + $0x70] sm:$0xff]
    %v70 = vld [vmem:[%s2 + $0x78] sm:$0xff]
    %v71 = vld [vmem:[%s2 + $0x80] sm:$0xff]
    %v72 = vld [vmem:[%s2 + $0x88] sm:$0xff]
    %v73 = vld [vmem:[%s2 + $0x90] sm:$0xff]
    %v74 = vld [vmem:[%s2 + $0x98] sm:$0xff]
    %v75 = vld [vmem:[%s2 + $0xa0] sm:$0xff]
    %v76 = vld [vmem:[%s2 + $0xa8] sm:$0xff]
    %v77 = vld [vmem:[%s2 + $0xb0] sm:$0xff]
    %v78 = vld [vmem:[%s2 + $0xb8] sm:$0xff]
    %v79 = vld [vmem:[%s5] sm:$0xff]
    %v80 = vld [vmem:[%s5 + $0x8] sm:$0xff]
    %v81 = vld [vmem:[%s5 + $0x10] sm:$0xff]
    %v82 = vld [vmem:[%s5 + $0x18] sm:$0xff]
    %v83 = vld [vmem:[%s5 + $0x20] sm:$0xff]
    %v84 = vld [vmem:[%s5 + $0x28] sm:$0xff]
    %v85 = vld [vmem:[%s5 + $0x30] sm:$0xff]
    %v86 = vld [vmem:[%s5 + $0x38] sm:$0xff]
    %v87 = vld [vmem:[%s5 + $0x40] sm:$0xff]
    %v88 = vld [vmem:[%s5 + $0x48] sm:$0xff]
    %v89 = vld [vmem:[%s5 + $0x50] sm:$0xff]
    %v90 = vld [vmem:[%s5 + $0x58] sm:$0xff]
    %v91 = vld [vmem:[%s5 + $0x60] sm:$0xff]
    %v92 = vld [vmem:[%s5 + $0x68] sm:$0xff]
    %v93 = vld [vmem:[%s5 + $0x70] sm:$0xff]
    %v94 = vld [vmem:[%s5 + $0x78] sm:$0xff]
    %v95 = vld [vmem:[%s5 + $0x80] sm:$0xff]
    %v96 = vld [vmem:[%s5 + $0x88] sm:$0xff]
    %v97 = vld [vmem:[%s5 + $0x90] sm:$0xff]
    %v98 = vld [vmem:[%s5 + $0x98] sm:$0xff]
    %v99 = vld [vmem:[%s5 + $0xa0] sm:$0xff]
    %v100 = vld [vmem:[%s5 + $0xa8] sm:$0xff]
    %v101 = vld [vmem:[%s5 + $0xb0] sm:$0xff]
    %v102 = vld [vmem:[%s5 + $0xb8] sm:$0xff]
    %v103 = vadd.f32 %v79, 1e-05
    %v104 = vadd.f32 %v80, 1e-05
    %v105 = vadd.f32 %v81, 1e-05
    %v106 = vadd.f32 %v82, 1e-05
    %v107 = vadd.f32 %v83, 1e-05
    %v108 = vadd.f32 %v84, 1e-05
    %v109 = vadd.f32 %v85, 1e-05
    %v110 = vadd.f32 %v86, 1e-05
    %v111 = vadd.f32 %v87, 1e-05
    %v112 = vadd.f32 %v88, 1e-05
    %v113 = vadd.f32 %v89, 1e-05
    %v114 = vadd.f32 %v90, 1e-05
    %v115 = vadd.f32 %v91, 1e-05
    %v116 = vadd.f32 %v92, 1e-05
    %v117 = vadd.f32 %v93, 1e-05
    %v118 = vadd.f32 %v94, 1e-05
    %v119 = vadd.f32 %v95, 1e-05
    %v120 = vadd.f32 %v96, 1e-05
    %v121 = vadd.f32 %v97, 1e-05
    %v122 = vadd.f32 %v98, 1e-05
    %v123 = vadd.f32 %v99, 1e-05
    %v124 = vadd.f32 %v100, 1e-05
    %v125 = vadd.f32 %v101, 1e-05
    %v126 = vadd.f32 %v102, 1e-05
    %v127 = vrsqrt.pop %v103
    %v128 = vrsqrt.pop %v104
    %v129 = vrsqrt.pop %v105
    %v130 = vrsqrt.pop %v106
    %v131 = vrsqrt.pop %v107
    %v132 = vrsqrt.pop %v108
    %v133 = vrsqrt.pop %v109
    %v134 = vrsqrt.pop %v110
    %v135 = vrsqrt.pop %v111
    %v136 = vrsqrt.pop %v112
    %v137 = vrsqrt.pop %v113
    %v138 = vrsqrt.pop %v114
    %v139 = vrsqrt.pop %v115
    %v140 = vrsqrt.pop %v116
    %v141 = vrsqrt.pop %v117
    %v142 = vrsqrt.pop %v118
    %v143 = vrsqrt.pop %v119
    %v144 = vrsqrt.pop %v120
    %v145 = vrsqrt.pop %v121
    %v146 = vrsqrt.pop %v122
    %v147 = vrsqrt.pop %v123
    %v148 = vrsqrt.pop %v124
    %v149 = vrsqrt.pop %v125
    %v150 = vrsqrt.pop %v126
    %v151 = vmul.f32 %v55, %v127
    %v152 = vmul.f32 %v56, %v128
    %v153 = vmul.f32 %v57, %v129
    %v154 = vmul.f32 %v58, %v130
    %v155 = vmul.f32 %v59, %v131
    %v156 = vmul.f32 %v60, %v132
    %v157 = vmul.f32 %v61, %v133
    %v158 = vmul.f32 %v62, %v134
    %v159 = vmul.f32 %v63, %v135
    %v160 = vmul.f32 %v64, %v136
    %v161 = vmul.f32 %v65, %v137
    %v162 = vmul.f32 %v66, %v138
    %v163 = vmul.f32 %v67, %v139
    %v164 = vmul.f32 %v68, %v140
    %v165 = vmul.f32 %v69, %v141
    %v166 = vmul.f32 %v70, %v142
    %v167 = vmul.f32 %v71, %v143
    %v168 = vmul.f32 %v72, %v144
    %v169 = vmul.f32 %v73, %v145
    %v170 = vmul.f32 %v74, %v146
    %v171 = vmul.f32 %v75, %v147
    %v172 = vmul.f32 %v76, %v148
    %v173 = vmul.f32 %v77, %v149
    %v174 = vmul.f32 %v78, %v150
    %v175 = vld [vmem:[%s3] sm:$0xff]
    %v176 = vld [vmem:[%s3 + $0x8] sm:$0xff]
    %v177 = vld [vmem:[%s3 + $0x10] sm:$0xff]
    %v178 = vld [vmem:[%s3 + $0x18] sm:$0xff]
    %v179 = vld [vmem:[%s3 + $0x20] sm:$0xff]
    %v180 = vld [vmem:[%s3 + $0x28] sm:$0xff]
    %v181 = vld [vmem:[%s3 + $0x30] sm:$0xff]
    %v182 = vld [vmem:[%s3 + $0x38] sm:$0xff]
    %v183 = vld [vmem:[%s3 + $0x40] sm:$0xff]
    %v184 = vld [vmem:[%s3 + $0x48] sm:$0xff]
    %v185 = vld [vmem:[%s3 + $0x50] sm:$0xff]
    %v186 = vld [vmem:[%s3 + $0x58] sm:$0xff]
    %v187 = vld [vmem:[%s3 + $0x60] sm:$0xff]
    %v188 = vld [vmem:[%s3 + $0x68] sm:$0xff]
    %v189 = vld [vmem:[%s3 + $0x70] sm:$0xff]
    %v190 = vld [vmem:[%s3 + $0x78] sm:$0xff]
    %v191 = vld [vmem:[%s3 + $0x80] sm:$0xff]
    %v192 = vld [vmem:[%s3 + $0x88] sm:$0xff]
    %v193 = vld [vmem:[%s3 + $0x90] sm:$0xff]
    %v194 = vld [vmem:[%s3 + $0x98] sm:$0xff]
    %v195 = vld [vmem:[%s3 + $0xa0] sm:$0xff]
    %v196 = vld [vmem:[%s3 + $0xa8] sm:$0xff]
    %v197 = vld [vmem:[%s3 + $0xb0] sm:$0xff]
    %v198 = vld [vmem:[%s3 + $0xb8] sm:$0xff]
    %v199 = vld [vmem:[%s4] sm:$0xff]
    %v200 = vld [vmem:[%s4 + $0x8] sm:$0xff]
    %v201 = vld [vmem:[%s4 + $0x10] sm:$0xff]
    %v202 = vld [vmem:[%s4 + $0x18] sm:$0xff]
    %v203 = vld [vmem:[%s4 + $0x20] sm:$0xff]
    %v204 = vld [vmem:[%s4 + $0x28] sm:$0xff]
    %v205 = vld [vmem:[%s4 + $0x30] sm:$0xff]
    %v206 = vld [vmem:[%s4 + $0x38] sm:$0xff]
    %v207 = vld [vmem:[%s4 + $0x40] sm:$0xff]
    %v208 = vld [vmem:[%s4 + $0x48] sm:$0xff]
    %v209 = vld [vmem:[%s4 + $0x50] sm:$0xff]
    %v210 = vld [vmem:[%s4 + $0x58] sm:$0xff]
    %v211 = vld [vmem:[%s4 + $0x60] sm:$0xff]
    %v212 = vld [vmem:[%s4 + $0x68] sm:$0xff]
    %v213 = vld [vmem:[%s4 + $0x70] sm:$0xff]
    %v214 = vld [vmem:[%s4 + $0x78] sm:$0xff]
    %v215 = vld [vmem:[%s4 + $0x80] sm:$0xff]
    %v216 = vld [vmem:[%s4 + $0x88] sm:$0xff]
    %v217 = vld [vmem:[%s4 + $0x90] sm:$0xff]
    %v218 = vld [vmem:[%s4 + $0x98] sm:$0xff]
    %v219 = vld [vmem:[%s4 + $0xa0] sm:$0xff]
    %v220 = vld [vmem:[%s4 + $0xa8] sm:$0xff]
    %v221 = vld [vmem:[%s4 + $0xb0] sm:$0xff]
    %v222 = vld [vmem:[%s4 + $0xb8] sm:$0xff]
    %v223 = vmul.f32 %v199, %v151
    %v224 = vmul.f32 %v200, %v152
    %v225 = vmul.f32 %v201, %v153
    %v226 = vmul.f32 %v202, %v154
    %v227 = vmul.f32 %v203, %v155
    %v228 = vmul.f32 %v204, %v156
    %v229 = vmul.f32 %v205, %v157
    %v230 = vmul.f32 %v206, %v158
    %v231 = vmul.f32 %v207, %v159
    %v232 = vmul.f32 %v208, %v160
    %v233 = vmul.f32 %v209, %v161
    %v234 = vmul.f32 %v210, %v162
    %v235 = vmul.f32 %v211, %v163
    %v236 = vmul.f32 %v212, %v164
    %v237 = vmul.f32 %v213, %v165
    %v238 = vmul.f32 %v214, %v166
    %v239 = vmul.f32 %v215, %v167
    %v240 = vmul.f32 %v216, %v168
    %v241 = vmul.f32 %v217, %v169
    %v242 = vmul.f32 %v218, %v170
    %v243 = vmul.f32 %v219, %v171
    %v244 = vmul.f32 %v220, %v172
    %v245 = vmul.f32 %v221, %v173
    %v246 = vmul.f32 %v222, %v174
    %v247 = vsub.f32 %v175, %v223
    %v248 = vsub.f32 %v176, %v224
    %v249 = vsub.f32 %v177, %v225
    %v250 = vsub.f32 %v178, %v226
    %v251 = vsub.f32 %v179, %v227
    %v252 = vsub.f32 %v180, %v228
    %v253 = vsub.f32 %v181, %v229
    %v254 = vsub.f32 %v182, %v230
    %v255 = vsub.f32 %v183, %v231
    %v256 = vsub.f32 %v184, %v232
    %v257 = vsub.f32 %v185, %v233
    %v258 = vsub.f32 %v186, %v234
    %v259 = vsub.f32 %v187, %v235
    %v260 = vsub.f32 %v188, %v236
    %v261 = vsub.f32 %v189, %v237
    %v262 = vsub.f32 %v190, %v238
    %v263 = vsub.f32 %v191, %v239
    %v264 = vsub.f32 %v192, %v240
    %v265 = vsub.f32 %v193, %v241
    %v266 = vsub.f32 %v194, %v242
    %v267 = vsub.f32 %v195, %v243
    %v268 = vsub.f32 %v196, %v244
    %v269 = vsub.f32 %v197, %v245
    %v270 = vsub.f32 %v198, %v246
    %v271 = vld [vmem:[#allocation5] sm:$0xff]
    %v272 = vld [vmem:[#allocation5 + $0x8] sm:$0xff]
    %v273 = vld [vmem:[#allocation5 + $0x10] sm:$0xff]
    %v274 = vld [vmem:[#allocation5 + $0x18] sm:$0xff]
    %v275 = vld [vmem:[#allocation5 + $0x20] sm:$0xff]
    %v276 = vld [vmem:[#allocation5 + $0x28] sm:$0xff]
    %v277 = vld [vmem:[#allocation5 + $0x30] sm:$0xff]
    %v278 = vld [vmem:[#allocation5 + $0x38] sm:$0xff]
    %v279 = vld [vmem:[#allocation5 + $0x40] sm:$0xff]
    %v280 = vld [vmem:[#allocation5 + $0x48] sm:$0xff]
    %v281 = vld [vmem:[#allocation5 + $0x50] sm:$0xff]
    %v282 = vld [vmem:[#allocation5 + $0x58] sm:$0xff]
    %v283 = vld [vmem:[#allocation5 + $0x60] sm:$0xff]
    %v284 = vld [vmem:[#allocation5 + $0x68] sm:$0xff]
    %v285 = vld [vmem:[#allocation5 + $0x70] sm:$0xff]
    %v286 = vld [vmem:[#allocation5 + $0x78] sm:$0xff]
    %v287 = vld [vmem:[#allocation5 + $0x80] sm:$0xff]
    %v288 = vld [vmem:[#allocation5 + $0x88] sm:$0xff]
    %v289 = vld [vmem:[#allocation5 + $0x90] sm:$0xff]
    %v290 = vld [vmem:[#allocation5 + $0x98] sm:$0xff]
    %v291 = vld [vmem:[#allocation5 + $0xa0] sm:$0xff]
    %v292 = vld [vmem:[#allocation5 + $0xa8] sm:$0xff]
    %v293 = vld [vmem:[#allocation5 + $0xb0] sm:$0xff]
    %v294 = vld [vmem:[#allocation5 + $0xb8] sm:$0xff]
    %v295 = vld [vmem:[#allocation5 + $0xc0] sm:$0xff]
    %v296 = vld [vmem:[#allocation5 + $0xc8] sm:$0xff]
    %v297 = vld [vmem:[#allocation5 + $0xd0] sm:$0xff]
    %v298 = vld [vmem:[#allocation5 + $0xd8] sm:$0xff]
    %v299 = vld [vmem:[#allocation5 + $0xe0] sm:$0xff]
    %v300 = vld [vmem:[#allocation5 + $0xe8] sm:$0xff]
    %v301 = vld [vmem:[#allocation5 + $0xf0] sm:$0xff]
    %v302 = vld [vmem:[#allocation5 + $0xf8] sm:$0xff]
    %v303 = vld [vmem:[#allocation5 + $0x100] sm:$0xff]
    %v304 = vld [vmem:[#allocation5 + $0x108] sm:$0xff]
    %v305 = vld [vmem:[#allocation5 + $0x110] sm:$0xff]
    %v306 = vld [vmem:[#allocation5 + $0x118] sm:$0xff]
    %v307 = vld [vmem:[#allocation5 + $0x120] sm:$0xff]
    %v308 = vld [vmem:[#allocation5 + $0x128] sm:$0xff]
    %v309 = vld [vmem:[#allocation5 + $0x130] sm:$0xff]
    %v310 = vld [vmem:[#allocation5 + $0x138] sm:$0xff]
    %v311 = vld [vmem:[#allocation5 + $0x140] sm:$0xff]
    %v312 = vld [vmem:[#allocation5 + $0x148] sm:$0xff]
    %v313 = vld [vmem:[#allocation5 + $0x150] sm:$0xff]
    %v314 = vld [vmem:[#allocation5 + $0x158] sm:$0xff]
    %v315 = vld [vmem:[#allocation5 + $0x160] sm:$0xff]
    %v316 = vld [vmem:[#allocation5 + $0x168] sm:$0xff]
    %v317 = vld [vmem:[#allocation5 + $0x170] sm:$0xff]
    %v318 = vld [vmem:[#allocation5 + $0x178] sm:$0xff]
    %v319 = vld [vmem:[#allocation5 + $0x180] sm:$0xff]
    %v320 = vld [vmem:[#allocation5 + $0x188] sm:$0xff]
    %v321 = vld [vmem:[#allocation5 + $0x190] sm:$0xff]
    %v322 = vld [vmem:[#allocation5 + $0x198] sm:$0xff]
    %v323 = vld [vmem:[#allocation5 + $0x1a0] sm:$0xff]
    %v324 = vld [vmem:[#allocation5 + $0x1a8] sm:$0xff]
    %v325 = vld [vmem:[#allocation5 + $0x1b0] sm:$0xff]
    %v326 = vld [vmem:[#allocation5 + $0x1b8] sm:$0xff]
    %v327 = vld [vmem:[#allocation5 + $0x1c0] sm:$0xff]
    %v328 = vld [vmem:[#allocation5 + $0x1c8] sm:$0xff]
    %v329 = vld [vmem:[#allocation5 + $0x1d0] sm:$0xff]
    %v330 = vld [vmem:[#allocation5 + $0x1d8] sm:$0xff]
    %v331 = vld [vmem:[#allocation5 + $0x1e0] sm:$0xff]
    %v332 = vld [vmem:[#allocation5 + $0x1e8] sm:$0xff]
    %v333 = vld [vmem:[#allocation5 + $0x1f0] sm:$0xff]
    %v334 = vld [vmem:[#allocation5 + $0x1f8] sm:$0xff]
    %v335 = vld [vmem:[#allocation5 + $0x200] sm:$0xff]
    %v336 = vld [vmem:[#allocation5 + $0x208] sm:$0xff]
    %v337 = vld [vmem:[#allocation5 + $0x210] sm:$0xff]
    %v338 = vld [vmem:[#allocation5 + $0x218] sm:$0xff]
    %v339 = vld [vmem:[#allocation5 + $0x220] sm:$0xff]
    %v340 = vld [vmem:[#allocation5 + $0x228] sm:$0xff]
    %v341 = vld [vmem:[#allocation5 + $0x230] sm:$0xff]
    %v342 = vld [vmem:[#allocation5 + $0x238] sm:$0xff]
    %v343 = vld [vmem:[#allocation5 + $0x240] sm:$0xff]
    %v344 = vld [vmem:[#allocation5 + $0x248] sm:$0xff]
    %v345 = vld [vmem:[#allocation5 + $0x250] sm:$0xff]
    %v346 = vld [vmem:[#allocation5 + $0x258] sm:$0xff]
    %v347 = vld [vmem:[#allocation5 + $0x260] sm:$0xff]
    %v348 = vld [vmem:[#allocation5 + $0x268] sm:$0xff]
    %v349 = vld [vmem:[#allocation5 + $0x270] sm:$0xff]
    %v350 = vld [vmem:[#allocation5 + $0x278] sm:$0xff]
    %v351 = vld [vmem:[#allocation5 + $0x280] sm:$0xff]
    %v352 = vld [vmem:[#allocation5 + $0x288] sm:$0xff]
    %v353 = vld [vmem:[#allocation5 + $0x290] sm:$0xff]
    %v354 = vld [vmem:[#allocation5 + $0x298] sm:$0xff]
    %v355 = vld [vmem:[#allocation5 + $0x2a0] sm:$0xff]
    %v356 = vld [vmem:[#allocation5 + $0x2a8] sm:$0xff]
    %v357 = vld [vmem:[#allocation5 + $0x2b0] sm:$0xff]
    %v358 = vld [vmem:[#allocation5 + $0x2b8] sm:$0xff]
    %v359 = vld [vmem:[#allocation5 + $0x2c0] sm:$0xff]
    %v360 = vld [vmem:[#allocation5 + $0x2c8] sm:$0xff]
    %v361 = vld [vmem:[#allocation5 + $0x2d0] sm:$0xff]
    %v362 = vld [vmem:[#allocation5 + $0x2d8] sm:$0xff]
    %v363 = vld [vmem:[#allocation5 + $0x2e0] sm:$0xff]
    %v364 = vld [vmem:[#allocation5 + $0x2e8] sm:$0xff]
    %v365 = vld [vmem:[#allocation5 + $0x2f0] sm:$0xff]
    %v366 = vld [vmem:[#allocation5 + $0x2f8] sm:$0xff]
    %v367 = vld [vmem:[#allocation5 + $0x300] sm:$0xff]
    %v368 = vld [vmem:[#allocation5 + $0x308] sm:$0xff]
    %v369 = vld [vmem:[#allocation5 + $0x310] sm:$0xff]
    %v370 = vld [vmem:[#allocation5 + $0x318] sm:$0xff]
    %v371 = vld [vmem:[#allocation5 + $0x320] sm:$0xff]
    %v372 = vld [vmem:[#allocation5 + $0x328] sm:$0xff]
    %v373 = vld [vmem:[#allocation5 + $0x330] sm:$0xff]
    %v374 = vld [vmem:[#allocation5 + $0x338] sm:$0xff]
    %v375 = vld [vmem:[#allocation5 + $0x340] sm:$0xff]
    %v376 = vld [vmem:[#allocation5 + $0x348] sm:$0xff]
    %v377 = vld [vmem:[#allocation5 + $0x350] sm:$0xff]
    %v378 = vld [vmem:[#allocation5 + $0x358] sm:$0xff]
    %v379 = vld [vmem:[#allocation5 + $0x360] sm:$0xff]
    %v380 = vld [vmem:[#allocation5 + $0x368] sm:$0xff]
    %v381 = vld [vmem:[#allocation5 + $0x370] sm:$0xff]
    %v382 = vld [vmem:[#allocation5 + $0x378] sm:$0xff]
    %v383 = vld [vmem:[#allocation5 + $0x380] sm:$0xff]
    %v384 = vld [vmem:[#allocation5 + $0x388] sm:$0xff]
    %v385 = vld [vmem:[#allocation5 + $0x390] sm:$0xff]
    %v386 = vld [vmem:[#allocation5 + $0x398] sm:$0xff]
    %v387 = vld [vmem:[#allocation5 + $0x3a0] sm:$0xff]
    %v388 = vld [vmem:[#allocation5 + $0x3a8] sm:$0xff]
    %v389 = vld [vmem:[#allocation5 + $0x3b0] sm:$0xff]
    %v390 = vld [vmem:[#allocation5 + $0x3b8] sm:$0xff]
    %v391 = vld [vmem:[#allocation5 + $0x3c0] sm:$0xff]
    %v392 = vld [vmem:[#allocation5 + $0x3c8] sm:$0xff]
    %v393 = vld [vmem:[#allocation5 + $0x3d0] sm:$0xff]
    %v394 = vld [vmem:[#allocation5 + $0x3d8] sm:$0xff]
    %v395 = vld [vmem:[#allocation5 + $0x3e0] sm:$0xff]
    %v396 = vld [vmem:[#allocation5 + $0x3e8] sm:$0xff]
    %v397 = vld [vmem:[#allocation5 + $0x3f0] sm:$0xff]
    %v398 = vld [vmem:[#allocation5 + $0x3f8] sm:$0xff]
    %v399 = vld [vmem:[#allocation5 + $0x400] sm:$0xff]
    %v400 = vld [vmem:[#allocation5 + $0x408] sm:$0xff]
    %v401 = vld [vmem:[#allocation5 + $0x410] sm:$0xff]
    %v402 = vld [vmem:[#allocation5 + $0x418] sm:$0xff]
    %v403 = vld [vmem:[#allocation5 + $0x420] sm:$0xff]
    %v404 = vld [vmem:[#allocation5 + $0x428] sm:$0xff]
    %v405 = vld [vmem:[#allocation5 + $0x430] sm:$0xff]
    %v406 = vld [vmem:[#allocation5 + $0x438] sm:$0xff]
    %v407 = vld [vmem:[#allocation5 + $0x440] sm:$0xff]
    %v408 = vld [vmem:[#allocation5 + $0x448] sm:$0xff]
    %v409 = vld [vmem:[#allocation5 + $0x450] sm:$0xff]
    %v410 = vld [vmem:[#allocation5 + $0x458] sm:$0xff]
    %v411 = vld [vmem:[#allocation5 + $0x460] sm:$0xff]
    %v412 = vld [vmem:[#allocation5 + $0x468] sm:$0xff]
    %v413 = vld [vmem:[#allocation5 + $0x470] sm:$0xff]
    %v414 = vld [vmem:[#allocation5 + $0x478] sm:$0xff]
    %v415 = vld [vmem:[#allocation5 + $0x480] sm:$0xff]
    %v416 = vld [vmem:[#allocation5 + $0x488] sm:$0xff]
    %v417 = vld [vmem:[#allocation5 + $0x490] sm:$0xff]
    %v418 = vld [vmem:[#allocation5 + $0x498] sm:$0xff]
    %v419 = vld [vmem:[#allocation5 + $0x4a0] sm:$0xff]
    %v420 = vld [vmem:[#allocation5 + $0x4a8] sm:$0xff]
    %v421 = vld [vmem:[#allocation5 + $0x4b0] sm:$0xff]
    %v422 = vld [vmem:[#allocation5 + $0x4b8] sm:$0xff]
    %v423 = vld [vmem:[#allocation5 + $0x4c0] sm:$0xff]
    %v424 = vld [vmem:[#allocation5 + $0x4c8] sm:$0xff]
    %v425 = vld [vmem:[#allocation5 + $0x4d0] sm:$0xff]
    %v426 = vld [vmem:[#allocation5 + $0x4d8] sm:$0xff]
    %v427 = vld [vmem:[#allocation5 + $0x4e0] sm:$0xff]
    %v428 = vld [vmem:[#allocation5 + $0x4e8] sm:$0xff]
    %v429 = vld [vmem:[#allocation5 + $0x4f0] sm:$0xff]
    %v430 = vld [vmem:[#allocation5 + $0x4f8] sm:$0xff]
    %v431 = vld [vmem:[#allocation5 + $0x500] sm:$0xff]
    %v432 = vld [vmem:[#allocation5 + $0x508] sm:$0xff]
    %v433 = vld [vmem:[#allocation5 + $0x510] sm:$0xff]
    %v434 = vld [vmem:[#allocation5 + $0x518] sm:$0xff]
    %v435 = vld [vmem:[#allocation5 + $0x520] sm:$0xff]
    %v436 = vld [vmem:[#allocation5 + $0x528] sm:$0xff]
    %v437 = vld [vmem:[#allocation5 + $0x530] sm:$0xff]
    %v438 = vld [vmem:[#allocation5 + $0x538] sm:$0xff]
    %v439 = vld [vmem:[#allocation2] sm:$0xff]
    %v440 = vld [vmem:[#allocation2 + $0x8] sm:$0xff]
    %v441 = vld [vmem:[#allocation2 + $0x10] sm:$0xff]
    %v442 = vld [vmem:[#allocation2 + $0x18] sm:$0xff]
    %v443 = vld [vmem:[#allocation2 + $0x20] sm:$0xff]
    %v444 = vld [vmem:[#allocation2 + $0x28] sm:$0xff]
    %v445 = vld [vmem:[#allocation2 + $0x30] sm:$0xff]
    %v446 = vld [vmem:[#allocation2 + $0x38] sm:$0xff]
    %v447 = vld [vmem:[#allocation2 + $0x40] sm:$0xff]
    %v448 = vld [vmem:[#allocation2 + $0x48] sm:$0xff]
    %v449 = vld [vmem:[#allocation2 + $0x50] sm:$0xff]
    %v450 = vld [vmem:[#allocation2 + $0x58] sm:$0xff]
    %v451 = vld [vmem:[#allocation2 + $0x60] sm:$0xff]
    %v452 = vld [vmem:[#allocation2 + $0x68] sm:$0xff]
    %v453 = vld [vmem:[#allocation2 + $0x70] sm:$0xff]
    %v454 = vld [vmem:[#allocation2 + $0x78] sm:$0xff]
    %v455 = vld [vmem:[#allocation2 + $0x80] sm:$0xff]
    %v456 = vld [vmem:[#allocation2 + $0x88] sm:$0xff]
    %v457 = vld [vmem:[#allocation2 + $0x90] sm:$0xff]
    %v458 = vld [vmem:[#allocation2 + $0x98] sm:$0xff]
    %v459 = vld [vmem:[#allocation2 + $0xa0] sm:$0xff]
    %v460 = vld [vmem:[#allocation2 + $0xa8] sm:$0xff]
    %v461 = vld [vmem:[#allocation2 + $0xb0] sm:$0xff]
    %v462 = vld [vmem:[#allocation2 + $0xb8] sm:$0xff]
    %v463 = vld [vmem:[#allocation2 + $0xc0] sm:$0xff]
    %v464 = vld [vmem:[#allocation2 + $0xc8] sm:$0xff]
    %v465 = vld [vmem:[#allocation2 + $0xd0] sm:$0xff]
    %v466 = vld [vmem:[#allocation2 + $0xd8] sm:$0xff]
    %v467 = vld [vmem:[#allocation2 + $0xe0] sm:$0xff]
    %v468 = vld [vmem:[#allocation2 + $0xe8] sm:$0xff]
    %v469 = vld [vmem:[#allocation2 + $0xf0] sm:$0xff]
    %v470 = vld [vmem:[#allocation2 + $0xf8] sm:$0xff]
    %v471 = vld [vmem:[#allocation2 + $0x100] sm:$0xff]
    %v472 = vld [vmem:[#allocation2 + $0x108] sm:$0xff]
    %v473 = vld [vmem:[#allocation2 + $0x110] sm:$0xff]
    %v474 = vld [vmem:[#allocation2 + $0x118] sm:$0xff]
    %v475 = vld [vmem:[#allocation2 + $0x120] sm:$0xff]
    %v476 = vld [vmem:[#allocation2 + $0x128] sm:$0xff]
    %v477 = vld [vmem:[#allocation2 + $0x130] sm:$0xff]
    %v478 = vld [vmem:[#allocation2 + $0x138] sm:$0xff]
    %v479 = vld [vmem:[#allocation2 + $0x140] sm:$0xff]
    %v480 = vld [vmem:[#allocation2 + $0x148] sm:$0xff]
    %v481 = vld [vmem:[#allocation2 + $0x150] sm:$0xff]
    %v482 = vld [vmem:[#allocation2 + $0x158] sm:$0xff]
    %v483 = vld [vmem:[#allocation2 + $0x160] sm:$0xff]
    %v484 = vld [vmem:[#allocation2 + $0x168] sm:$0xff]
    %v485 = vld [vmem:[#allocation2 + $0x170] sm:$0xff]
    %v486 = vld [vmem:[#allocation2 + $0x178] sm:$0xff]
    %v487 = vld [vmem:[#allocation2 + $0x180] sm:$0xff]
    %v488 = vld [vmem:[#allocation2 + $0x188] sm:$0xff]
    %v489 = vld [vmem:[#allocation2 + $0x190] sm:$0xff]
    %v490 = vld [vmem:[#allocation2 + $0x198] sm:$0xff]
    %v491 = vld [vmem:[#allocation2 + $0x1a0] sm:$0xff]
    %v492 = vld [vmem:[#allocation2 + $0x1a8] sm:$0xff]
    %v493 = vld [vmem:[#allocation2 + $0x1b0] sm:$0xff]
    %v494 = vld [vmem:[#allocation2 + $0x1b8] sm:$0xff]
    %v495 = vld [vmem:[#allocation2 + $0x1c0] sm:$0xff]
    %v496 = vld [vmem:[#allocation2 + $0x1c8] sm:$0xff]
    %v497 = vld [vmem:[#allocation2 + $0x1d0] sm:$0xff]
    %v498 = vld [vmem:[#allocation2 + $0x1d8] sm:$0xff]
    %v499 = vld [vmem:[#allocation2 + $0x1e0] sm:$0xff]
    %v500 = vld [vmem:[#allocation2 + $0x1e8] sm:$0xff]
    %v501 = vld [vmem:[#allocation2 + $0x1f0] sm:$0xff]
    %v502 = vld [vmem:[#allocation2 + $0x1f8] sm:$0xff]
    %v503 = vld [vmem:[#allocation2 + $0x200] sm:$0xff]
    %v504 = vld [vmem:[#allocation2 + $0x208] sm:$0xff]
    %v505 = vld [vmem:[#allocation2 + $0x210] sm:$0xff]
    %v506 = vld [vmem:[#allocation2 + $0x218] sm:$0xff]
    %v507 = vld [vmem:[#allocation2 + $0x220] sm:$0xff]
    %v508 = vld [vmem:[#allocation2 + $0x228] sm:$0xff]
    %v509 = vld [vmem:[#allocation2 + $0x230] sm:$0xff]
    %v510 = vld [vmem:[#allocation2 + $0x238] sm:$0xff]
    %v511 = vld [vmem:[#allocation2 + $0x240] sm:$0xff]
    %v512 = vld [vmem:[#allocation2 + $0x248] sm:$0xff]
    %v513 = vld [vmem:[#allocation2 + $0x250] sm:$0xff]
    %v514 = vld [vmem:[#allocation2 + $0x258] sm:$0xff]
    %v515 = vld [vmem:[#allocation2 + $0x260] sm:$0xff]
    %v516 = vld [vmem:[#allocation2 + $0x268] sm:$0xff]
    %v517 = vld [vmem:[#allocation2 + $0x270] sm:$0xff]
    %v518 = vld [vmem:[#allocation2 + $0x278] sm:$0xff]
    %v519 = vld [vmem:[#allocation2 + $0x280] sm:$0xff]
    %v520 = vld [vmem:[#allocation2 + $0x288] sm:$0xff]
    %v521 = vld [vmem:[#allocation2 + $0x290] sm:$0xff]
    %v522 = vld [vmem:[#allocation2 + $0x298] sm:$0xff]
    %v523 = vld [vmem:[#allocation2 + $0x2a0] sm:$0xff]
    %v524 = vld [vmem:[#allocation2 + $0x2a8] sm:$0xff]
    %v525 = vld [vmem:[#allocation2 + $0x2b0] sm:$0xff]
    %v526 = vld [vmem:[#allocation2 + $0x2b8] sm:$0xff]
    %v527 = vld [vmem:[#allocation2 + $0x2c0] sm:$0xff]
    %v528 = vld [vmem:[#allocation2 + $0x2c8] sm:$0xff]
    %v529 = vld [vmem:[#allocation2 + $0x2d0] sm:$0xff]
    %v530 = vld [vmem:[#allocation2 + $0x2d8] sm:$0xff]
    %v531 = vld [vmem:[#allocation2 + $0x2e0] sm:$0xff]
    %v532 = vld [vmem:[#allocation2 + $0x2e8] sm:$0xff]
    %v533 = vld [vmem:[#allocation2 + $0x2f0] sm:$0xff]
    %v534 = vld [vmem:[#allocation2 + $0x2f8] sm:$0xff]
    %v535 = vld [vmem:[#allocation2 + $0x300] sm:$0xff]
    %v536 = vld [vmem:[#allocation2 + $0x308] sm:$0xff]
    %v537 = vld [vmem:[#allocation2 + $0x310] sm:$0xff]
    %v538 = vld [vmem:[#allocation2 + $0x318] sm:$0xff]
    %v539 = vld [vmem:[#allocation2 + $0x320] sm:$0xff]
    %v540 = vld [vmem:[#allocation2 + $0x328] sm:$0xff]
    %v541 = vld [vmem:[#allocation2 + $0x330] sm:$0xff]
    %v542 = vld [vmem:[#allocation2 + $0x338] sm:$0xff]
    %v543 = vld [vmem:[#allocation2 + $0x340] sm:$0xff]
    %v544 = vld [vmem:[#allocation2 + $0x348] sm:$0xff]
    %v545 = vld [vmem:[#allocation2 + $0x350] sm:$0xff]
    %v546 = vld [vmem:[#allocation2 + $0x358] sm:$0xff]
    %v547 = vld [vmem:[#allocation2 + $0x360] sm:$0xff]
    %v548 = vld [vmem:[#allocation2 + $0x368] sm:$0xff]
    %v549 = vld [vmem:[#allocation2 + $0x370] sm:$0xff]
    %v550 = vld [vmem:[#allocation2 + $0x378] sm:$0xff]
    %v551 = vld [vmem:[#allocation2 + $0x380] sm:$0xff]
    %v552 = vld [vmem:[#allocation2 + $0x388] sm:$0xff]
    %v553 = vld [vmem:[#allocation2 + $0x390] sm:$0xff]
    %v554 = vld [vmem:[#allocation2 + $0x398] sm:$0xff]
    %v555 = vld [vmem:[#allocation2 + $0x3a0] sm:$0xff]
    %v556 = vld [vmem:[#allocation2 + $0x3a8] sm:$0xff]
    %v557 = vld [vmem:[#allocation2 + $0x3b0] sm:$0xff]
    %v558 = vld [vmem:[#allocation2 + $0x3b8] sm:$0xff]
    %v559 = vld [vmem:[#allocation2 + $0x3c0] sm:$0xff]
    %v560 = vld [vmem:[#allocation2 + $0x3c8] sm:$0xff]
    %v561 = vld [vmem:[#allocation2 + $0x3d0] sm:$0xff]
    %v562 = vld [vmem:[#allocation2 + $0x3d8] sm:$0xff]
    %v563 = vld [vmem:[#allocation2 + $0x3e0] sm:$0xff]
    %v564 = vld [vmem:[#allocation2 + $0x3e8] sm:$0xff]
    %v565 = vld [vmem:[#allocation2 + $0x3f0] sm:$0xff]
    %v566 = vld [vmem:[#allocation2 + $0x3f8] sm:$0xff]
    %v567 = vld [vmem:[#allocation2 + $0x400] sm:$0xff]
    %v568 = vld [vmem:[#allocation2 + $0x408] sm:$0xff]
    %v569 = vld [vmem:[#allocation2 + $0x410] sm:$0xff]
    %v570 = vld [vmem:[#allocation2 + $0x418] sm:$0xff]
    %v571 = vld [vmem:[#allocation2 + $0x420] sm:$0xff]
    %v572 = vld [vmem:[#allocation2 + $0x428] sm:$0xff]
    %v573 = vld [vmem:[#allocation2 + $0x430] sm:$0xff]
    %v574 = vld [vmem:[#allocation2 + $0x438] sm:$0xff]
    %v575 = vld [vmem:[#allocation2 + $0x440] sm:$0xff]
    %v576 = vld [vmem:[#allocation2 + $0x448] sm:$0xff]
    %v577 = vld [vmem:[#allocation2 + $0x450] sm:$0xff]
    %v578 = vld [vmem:[#allocation2 + $0x458] sm:$0xff]
    %v579 = vld [vmem:[#allocation2 + $0x460] sm:$0xff]
    %v580 = vld [vmem:[#allocation2 + $0x468] sm:$0xff]
    %v581 = vld [vmem:[#allocation2 + $0x470] sm:$0xff]
    %v582 = vld [vmem:[#allocation2 + $0x478] sm:$0xff]
    %v583 = vld [vmem:[#allocation2 + $0x480] sm:$0xff]
    %v584 = vld [vmem:[#allocation2 + $0x488] sm:$0xff]
    %v585 = vld [vmem:[#allocation2 + $0x490] sm:$0xff]
    %v586 = vld [vmem:[#allocation2 + $0x498] sm:$0xff]
    %v587 = vld [vmem:[#allocation2 + $0x4a0] sm:$0xff]
    %v588 = vld [vmem:[#allocation2 + $0x4a8] sm:$0xff]
    %v589 = vld [vmem:[#allocation2 + $0x4b0] sm:$0xff]
    %v590 = vld [vmem:[#allocation2 + $0x4b8] sm:$0xff]
    %v591 = vld [vmem:[#allocation2 + $0x4c0] sm:$0xff]
    %v592 = vld [vmem:[#allocation2 + $0x4c8] sm:$0xff]
    %v593 = vld [vmem:[#allocation2 + $0x4d0] sm:$0xff]
    %v594 = vld [vmem:[#allocation2 + $0x4d8] sm:$0xff]
    %v595 = vld [vmem:[#allocation2 + $0x4e0] sm:$0xff]
    %v596 = vld [vmem:[#allocation2 + $0x4e8] sm:$0xff]
    %v597 = vld [vmem:[#allocation2 + $0x4f0] sm:$0xff]
    %v598 = vld [vmem:[#allocation2 + $0x4f8] sm:$0xff]
    %v599 = vld [vmem:[#allocation2 + $0x500] sm:$0xff]
    %v600 = vld [vmem:[#allocation2 + $0x508] sm:$0xff]
    %v601 = vld [vmem:[#allocation2 + $0x510] sm:$0xff]
    %v602 = vld [vmem:[#allocation2 + $0x518] sm:$0xff]
    %v603 = vld [vmem:[#allocation2 + $0x520] sm:$0xff]
    %v604 = vld [vmem:[#allocation2 + $0x528] sm:$0xff]
    %v605 = vld [vmem:[#allocation2 + $0x530] sm:$0xff]
    %v606 = vld [vmem:[#allocation2 + $0x538] sm:$0xff]
    %608 = vset.pattern.permute.xlu0 0
    %609 = vperm.xlu0 %608, %v151
    %v610 = vpop.permute.xlu0 %609
    %613 = vset.pattern.permute.xlu0 0
    %614 = vperm.xlu0 %613, %v152
    %v615 = vpop.permute.xlu0 %614
    %618 = vset.pattern.permute.xlu0 0
    %619 = vperm.xlu0 %618, %v153
    %v620 = vpop.permute.xlu0 %619
    %623 = vset.pattern.permute.xlu0 0
    %624 = vperm.xlu0 %623, %v154
    %v625 = vpop.permute.xlu0 %624
    %628 = vset.pattern.permute.xlu0 0
    %629 = vperm.xlu0 %628, %v155
    %v630 = vpop.permute.xlu0 %629
    %633 = vset.pattern.permute.xlu0 0
    %634 = vperm.xlu0 %633, %v156
    %v635 = vpop.permute.xlu0 %634
    %638 = vset.pattern.permute.xlu0 0
    %639 = vperm.xlu0 %638, %v157
    %v640 = vpop.permute.xlu0 %639
    %643 = vset.pattern.permute.xlu0 0
    %644 = vperm.xlu0 %643, %v158
    %v645 = vpop.permute.xlu0 %644
    %648 = vset.pattern.permute.xlu0 0
    %649 = vperm.xlu0 %648, %v159
    %v650 = vpop.permute.xlu0 %649
    %653 = vset.pattern.permute.xlu0 0
    %654 = vperm.xlu0 %653, %v160
    %v655 = vpop.permute.xlu0 %654
    %658 = vset.pattern.permute.xlu0 0
    %659 = vperm.xlu0 %658, %v161
    %v660 = vpop.permute.xlu0 %659
    %663 = vset.pattern.permute.xlu0 0
    %664 = vperm.xlu0 %663, %v162
    %v665 = vpop.permute.xlu0 %664
    %668 = vset.pattern.permute.xlu0 0
    %669 = vperm.xlu0 %668, %v163
    %v670 = vpop.permute.xlu0 %669
    %673 = vset.pattern.permute.xlu0 0
    %674 = vperm.xlu0 %673, %v164
    %v675 = vpop.permute.xlu0 %674
    %678 = vset.pattern.permute.xlu0 0
    %679 = vperm.xlu0 %678, %v165
    %v680 = vpop.permute.xlu0 %679
    %683 = vset.pattern.permute.xlu0 0
    %684 = vperm.xlu0 %683, %v166
    %v685 = vpop.permute.xlu0 %684
    %688 = vset.pattern.permute.xlu0 0
    %689 = vperm.xlu0 %688, %v167
    %v690 = vpop.permute.xlu0 %689
    %693 = vset.pattern.permute.xlu0 0
    %694 = vperm.xlu0 %693, %v168
    %v695 = vpop.permute.xlu0 %694
    %698 = vset.pattern.permute.xlu0 0
    %699 = vperm.xlu0 %698, %v169
    %v700 = vpop.permute.xlu0 %699
    %703 = vset.pattern.permute.xlu0 0
    %704 = vperm.xlu0 %703, %v170
    %v705 = vpop.permute.xlu0 %704
    %708 = vset.pattern.permute.xlu0 0
    %709 = vperm.xlu0 %708, %v171
    %v710 = vpop.permute.xlu0 %709
    %713 = vset.pattern.permute.xlu0 0
    %714 = vperm.xlu0 %713, %v172
    %v715 = vpop.permute.xlu0 %714
    %718 = vset.pattern.permute.xlu0 0
    %719 = vperm.xlu0 %718, %v173
    %v720 = vpop.permute.xlu0 %719
    %723 = vset.pattern.permute.xlu0 0
    %724 = vperm.xlu0 %723, %v174
    %v725 = vpop.permute.xlu0 %724
    %v727 = vmul.f32 %v439, %v610
    %v728 = vmul.f32 %v440, %v610
    %v729 = vmul.f32 %v441, %v610
    %v730 = vmul.f32 %v442, %v610
    %v731 = vmul.f32 %v443, %v610
    %v732 = vmul.f32 %v444, %v610
    %v733 = vmul.f32 %v445, %v610
    %v734 = vmul.f32 %v446, %v615
    %v735 = vmul.f32 %v447, %v615
    %v736 = vmul.f32 %v448, %v615
    %v737 = vmul.f32 %v449, %v615
    %v738 = vmul.f32 %v450, %v615
    %v739 = vmul.f32 %v451, %v615
    %v740 = vmul.f32 %v452, %v615
    %v741 = vmul.f32 %v453, %v620
    %v742 = vmul.f32 %v454, %v620
    %v743 = vmul.f32 %v455, %v620
    %v744 = vmul.f32 %v456, %v620
    %v745 = vmul.f32 %v457, %v620
    %v746 = vmul.f32 %v458, %v620
    %v747 = vmul.f32 %v459, %v620
    %v748 = vmul.f32 %v460, %v625
    %v749 = vmul.f32 %v461, %v625
    %v750 = vmul.f32 %v462, %v625
    %v751 = vmul.f32 %v463, %v625
    %v752 = vmul.f32 %v464, %v625
    %v753 = vmul.f32 %v465, %v625
    %v754 = vmul.f32 %v466, %v625
    %v755 = vmul.f32 %v467, %v630
    %v756 = vmul.f32 %v468, %v630
    %v757 = vmul.f32 %v469, %v630
    %v758 = vmul.f32 %v470, %v630
    %v759 = vmul.f32 %v471, %v630
    %v760 = vmul.f32 %v472, %v630
    %v761 = vmul.f32 %v473, %v630
    %v762 = vmul.f32 %v474, %v635
    %v763 = vmul.f32 %v475, %v635
    %v764 = vmul.f32 %v476, %v635
    %v765 = vmul.f32 %v477, %v635
    %v766 = vmul.f32 %v478, %v635
    %v767 = vmul.f32 %v479, %v635
    %v768 = vmul.f32 %v480, %v635
    %v769 = vmul.f32 %v481, %v640
    %v770 = vmul.f32 %v482, %v640
    %v771 = vmul.f32 %v483, %v640
    %v772 = vmul.f32 %v484, %v640
    %v773 = vmul.f32 %v485, %v640
    %v774 = vmul.f32 %v486, %v640
    %v775 = vmul.f32 %v487, %v640
    %v776 = vmul.f32 %v488, %v645
    %v777 = vmul.f32 %v489, %v645
    %v778 = vmul.f32 %v490, %v645
    %v779 = vmul.f32 %v491, %v645
    %v780 = vmul.f32 %v492, %v645
    %v781 = vmul.f32 %v493, %v645
    %v782 = vmul.f32 %v494, %v645
    %v783 = vmul.f32 %v495, %v650
    %v784 = vmul.f32 %v496, %v650
    %v785 = vmul.f32 %v497, %v650
    %v786 = vmul.f32 %v498, %v650
    %v787 = vmul.f32 %v499, %v650
    %v788 = vmul.f32 %v500, %v650
    %v789 = vmul.f32 %v501, %v650
    %v790 = vmul.f32 %v502, %v655
    %v791 = vmul.f32 %v503, %v655
    %v792 = vmul.f32 %v504, %v655
    %v793 = vmul.f32 %v505, %v655
    %v794 = vmul.f32 %v506, %v655
    %v795 = vmul.f32 %v507, %v655
    %v796 = vmul.f32 %v508, %v655
    %v797 = vmul.f32 %v509, %v660
    %v798 = vmul.f32 %v510, %v660
    %v799 = vmul.f32 %v511, %v660
    %v800 = vmul.f32 %v512, %v660
    %v801 = vmul.f32 %v513, %v660
    %v802 = vmul.f32 %v514, %v660
    %v803 = vmul.f32 %v515, %v660
    %v804 = vmul.f32 %v516, %v665
    %v805 = vmul.f32 %v517, %v665
    %v806 = vmul.f32 %v518, %v665
    %v807 = vmul.f32 %v519, %v665
    %v808 = vmul.f32 %v520, %v665
    %v809 = vmul.f32 %v521, %v665
    %v810 = vmul.f32 %v522, %v665
    %v811 = vmul.f32 %v523, %v670
    %v812 = vmul.f32 %v524, %v670
    %v813 = vmul.f32 %v525, %v670
    %v814 = vmul.f32 %v526, %v670
    %v815 = vmul.f32 %v527, %v670
    %v816 = vmul.f32 %v528, %v670
    %v817 = vmul.f32 %v529, %v670
    %v818 = vmul.f32 %v530, %v675
    %v819 = vmul.f32 %v531, %v675
    %v820 = vmul.f32 %v532, %v675
    %v821 = vmul.f32 %v533, %v675
    %v822 = vmul.f32 %v534, %v675
    %v823 = vmul.f32 %v535, %v675
    %v824 = vmul.f32 %v536, %v675
    %v825 = vmul.f32 %v537, %v680
    %v826 = vmul.f32 %v538, %v680
    %v827 = vmul.f32 %v539, %v680
    %v828 = vmul.f32 %v540, %v680
    %v829 = vmul.f32 %v541, %v680
    %v830 = vmul.f32 %v542, %v680
    %v831 = vmul.f32 %v543, %v680
    %v832 = vmul.f32 %v544, %v685
    %v833 = vmul.f32 %v545, %v685
    %v834 = vmul.f32 %v546, %v685
    %v835 = vmul.f32 %v547, %v685
    %v836 = vmul.f32 %v548, %v685
    %v837 = vmul.f32 %v549, %v685
    %v838 = vmul.f32 %v550, %v685
    %v839 = vmul.f32 %v551, %v690
    %v840 = vmul.f32 %v552, %v690
    %v841 = vmul.f32 %v553, %v690
    %v842 = vmul.f32 %v554, %v690
    %v843 = vmul.f32 %v555, %v690
    %v844 = vmul.f32 %v556, %v690
    %v845 = vmul.f32 %v557, %v690
    %v846 = vmul.f32 %v558, %v695
    %v847 = vmul.f32 %v559, %v695
    %v848 = vmul.f32 %v560, %v695
    %v849 = vmul.f32 %v561, %v695
    %v850 = vmul.f32 %v562, %v695
    %v851 = vmul.f32 %v563, %v695
    %v852 = vmul.f32 %v564, %v695
    %v853 = vmul.f32 %v565, %v700
    %v854 = vmul.f32 %v566, %v700
    %v855 = vmul.f32 %v567, %v700
    %v856 = vmul.f32 %v568, %v700
    %v857 = vmul.f32 %v569, %v700
    %v858 = vmul.f32 %v570, %v700
    %v859 = vmul.f32 %v571, %v700
    %v860 = vmul.f32 %v572, %v705
    %v861 = vmul.f32 %v573, %v705
    %v862 = vmul.f32 %v574, %v705
    %v863 = vmul.f32 %v575, %v705
    %v864 = vmul.f32 %v576, %v705
    %v865 = vmul.f32 %v577, %v705
    %v866 = vmul.f32 %v578, %v705
    %v867 = vmul.f32 %v579, %v710
    %v868 = vmul.f32 %v580, %v710
    %v869 = vmul.f32 %v581, %v710
    %v870 = vmul.f32 %v582, %v710
    %v871 = vmul.f32 %v583, %v710
    %v872 = vmul.f32 %v584, %v710
    %v873 = vmul.f32 %v585, %v710
    %v874 = vmul.f32 %v586, %v715
    %v875 = vmul.f32 %v587, %v715
    %v876 = vmul.f32 %v588, %v715
    %v877 = vmul.f32 %v589, %v715
    %v878 = vmul.f32 %v590, %v715
    %v879 = vmul.f32 %v591, %v715
    %v880 = vmul.f32 %v592, %v715
    %v881 = vmul.f32 %v593, %v720
    %v882 = vmul.f32 %v594, %v720
    %v883 = vmul.f32 %v595, %v720
    %v884 = vmul.f32 %v596, %v720
    %v885 = vmul.f32 %v597, %v720
    %v886 = vmul.f32 %v598, %v720
    %v887 = vmul.f32 %v599, %v720
    %v888 = vmul.f32 %v600, %v725
    %v889 = vmul.f32 %v601, %v725
    %v890 = vmul.f32 %v602, %v725
    %v891 = vmul.f32 %v603, %v725
    %v892 = vmul.f32 %v604, %v725
    %v893 = vmul.f32 %v605, %v725
    %v894 = vmul.f32 %v606, %v725
    %v895 = vadd.f32 %v271, %v727
    %v896 = vadd.f32 %v272, %v728
    %v897 = vadd.f32 %v273, %v729
    %v898 = vadd.f32 %v274, %v730
    %v899 = vadd.f32 %v275, %v731
    %v900 = vadd.f32 %v276, %v732
    %v901 = vadd.f32 %v277, %v733
    %v902 = vadd.f32 %v278, %v734
    %v903 = vadd.f32 %v279, %v735
    %v904 = vadd.f32 %v280, %v736
    %v905 = vadd.f32 %v281, %v737
    %v906 = vadd.f32 %v282, %v738
    %v907 = vadd.f32 %v283, %v739
    %v908 = vadd.f32 %v284, %v740
    %v909 = vadd.f32 %v285, %v741
    %v910 = vadd.f32 %v286, %v742
    %v911 = vadd.f32 %v287, %v743
    %v912 = vadd.f32 %v288, %v744
    %v913 = vadd.f32 %v289, %v745
    %v914 = vadd.f32 %v290, %v746
    %v915 = vadd.f32 %v291, %v747
    %v916 = vadd.f32 %v292, %v748
    %v917 = vadd.f32 %v293, %v749
    %v918 = vadd.f32 %v294, %v750
    %v919 = vadd.f32 %v295, %v751
    %v920 = vadd.f32 %v296, %v752
    %v921 = vadd.f32 %v297, %v753
    %v922 = vadd.f32 %v298, %v754
    %v923 = vadd.f32 %v299, %v755
    %v924 = vadd.f32 %v300, %v756
    %v925 = vadd.f32 %v301, %v757
    %v926 = vadd.f32 %v302, %v758
    %v927 = vadd.f32 %v303, %v759
    %v928 = vadd.f32 %v304, %v760
    %v929 = vadd.f32 %v305, %v761
    %v930 = vadd.f32 %v306, %v762
    %v931 = vadd.f32 %v307, %v763
    %v932 = vadd.f32 %v308, %v764
    %v933 = vadd.f32 %v309, %v765
    %v934 = vadd.f32 %v310, %v766
    %v935 = vadd.f32 %v311, %v767
    %v936 = vadd.f32 %v312, %v768
    %v937 = vadd.f32 %v313, %v769
    %v938 = vadd.f32 %v314, %v770
    %v939 = vadd.f32 %v315, %v771
    %v940 = vadd.f32 %v316, %v772
    %v941 = vadd.f32 %v317, %v773
    %v942 = vadd.f32 %v318, %v774
    %v943 = vadd.f32 %v319, %v775
    %v944 = vadd.f32 %v320, %v776
    %v945 = vadd.f32 %v321, %v777
    %v946 = vadd.f32 %v322, %v778
    %v947 = vadd.f32 %v323, %v779
    %v948 = vadd.f32 %v324, %v780
    %v949 = vadd.f32 %v325, %v781
    %v950 = vadd.f32 %v326, %v782
    %v951 = vadd.f32 %v327, %v783
    %v952 = vadd.f32 %v328, %v784
    %v953 = vadd.f32 %v329, %v785
    %v954 = vadd.f32 %v330, %v786
    %v955 = vadd.f32 %v331, %v787
    %v956 = vadd.f32 %v332, %v788
    %v957 = vadd.f32 %v333, %v789
    %v958 = vadd.f32 %v334, %v790
    %v959 = vadd.f32 %v335, %v791
    %v960 = vadd.f32 %v336, %v792
    %v961 = vadd.f32 %v337, %v793
    %v962 = vadd.f32 %v338, %v794
    %v963 = vadd.f32 %v339, %v795
    %v964 = vadd.f32 %v340, %v796
    %v965 = vadd.f32 %v341, %v797
    %v966 = vadd.f32 %v342, %v798
    %v967 = vadd.f32 %v343, %v799
    %v968 = vadd.f32 %v344, %v800
    %v969 = vadd.f32 %v345, %v801
    %v970 = vadd.f32 %v346, %v802
    %v971 = vadd.f32 %v347, %v803
    %v972 = vadd.f32 %v348, %v804
    %v973 = vadd.f32 %v349, %v805
    %v974 = vadd.f32 %v350, %v806
    %v975 = vadd.f32 %v351, %v807
    %v976 = vadd.f32 %v352, %v808
    %v977 = vadd.f32 %v353, %v809
    %v978 = vadd.f32 %v354, %v810
    %v979 = vadd.f32 %v355, %v811
    %v980 = vadd.f32 %v356, %v812
    %v981 = vadd.f32 %v357, %v813
    %v982 = vadd.f32 %v358, %v814
    %v983 = vadd.f32 %v359, %v815
    %v984 = vadd.f32 %v360, %v816
    %v985 = vadd.f32 %v361, %v817
    %v986 = vadd.f32 %v362, %v818
    %v987 = vadd.f32 %v363, %v819
    %v988 = vadd.f32 %v364, %v820
    %v989 = vadd.f32 %v365, %v821
    %v990 = vadd.f32 %v366, %v822
    %v991 = vadd.f32 %v367, %v823
    %v992 = vadd.f32 %v368, %v824
    %v993 = vadd.f32 %v369, %v825
    %v994 = vadd.f32 %v370, %v826
    %v995 = vadd.f32 %v371, %v827
    %v996 = vadd.f32 %v372, %v828
    %v997 = vadd.f32 %v373, %v829
    %v998 = vadd.f32 %v374, %v830
    %v999 = vadd.f32 %v375, %v831
    %v1000 = vadd.f32 %v376, %v832
    %v1001 = vadd.f32 %v377, %v833
    %v1002 = vadd.f32 %v378, %v834
    %v1003 = vadd.f32 %v379, %v835
    %v1004 = vadd.f32 %v380, %v836
    %v1005 = vadd.f32 %v381, %v837
    %v1006 = vadd.f32 %v382, %v838
    %v1007 = vadd.f32 %v383, %v839
    %v1008 = vadd.f32 %v384, %v840
    %v1009 = vadd.f32 %v385, %v841
    %v1010 = vadd.f32 %v386, %v842
    %v1011 = vadd.f32 %v387, %v843
    %v1012 = vadd.f32 %v388, %v844
    %v1013 = vadd.f32 %v389, %v845
    %v1014 = vadd.f32 %v390, %v846
    %v1015 = vadd.f32 %v391, %v847
    %v1016 = vadd.f32 %v392, %v848
    %v1017 = vadd.f32 %v393, %v849
    %v1018 = vadd.f32 %v394, %v850
    %v1019 = vadd.f32 %v395, %v851
    %v1020 = vadd.f32 %v396, %v852
    %v1021 = vadd.f32 %v397, %v853
    %v1022 = vadd.f32 %v398, %v854
    %v1023 = vadd.f32 %v399, %v855
    %v1024 = vadd.f32 %v400, %v856
    %v1025 = vadd.f32 %v401, %v857
    %v1026 = vadd.f32 %v402, %v858
    %v1027 = vadd.f32 %v403, %v859
    %v1028 = vadd.f32 %v404, %v860
    %v1029 = vadd.f32 %v405, %v861
    %v1030 = vadd.f32 %v406, %v862
    %v1031 = vadd.f32 %v407, %v863
    %v1032 = vadd.f32 %v408, %v864
    %v1033 = vadd.f32 %v409, %v865
    %v1034 = vadd.f32 %v410, %v866
    %v1035 = vadd.f32 %v411, %v867
    %v1036 = vadd.f32 %v412, %v868
    %v1037 = vadd.f32 %v413, %v869
    %v1038 = vadd.f32 %v414, %v870
    %v1039 = vadd.f32 %v415, %v871
    %v1040 = vadd.f32 %v416, %v872
    %v1041 = vadd.f32 %v417, %v873
    %v1042 = vadd.f32 %v418, %v874
    %v1043 = vadd.f32 %v419, %v875
    %v1044 = vadd.f32 %v420, %v876
    %v1045 = vadd.f32 %v421, %v877
    %v1046 = vadd.f32 %v422, %v878
    %v1047 = vadd.f32 %v423, %v879
    %v1048 = vadd.f32 %v424, %v880
    %v1049 = vadd.f32 %v425, %v881
    %v1050 = vadd.f32 %v426, %v882
    %v1051 = vadd.f32 %v427, %v883
    %v1052 = vadd.f32 %v428, %v884
    %v1053 = vadd.f32 %v429, %v885
    %v1054 = vadd.f32 %v430, %v886
    %v1055 = vadd.f32 %v431, %v887
    %v1056 = vadd.f32 %v432, %v888
    %v1057 = vadd.f32 %v433, %v889
    %v1058 = vadd.f32 %v434, %v890
    %v1059 = vadd.f32 %v435, %v891
    %v1060 = vadd.f32 %v436, %v892
    %v1061 = vadd.f32 %v437, %v893
    %v1062 = vadd.f32 %v438, %v894
    %1064 = vset.pattern.permute.xlu0 0
    %1065 = vperm.xlu0 %1064, %v247
    %v1066 = vpop.permute.xlu0 %1065
    %1069 = vset.pattern.permute.xlu0 0
    %1070 = vperm.xlu0 %1069, %v248
    %v1071 = vpop.permute.xlu0 %1070
    %1074 = vset.pattern.permute.xlu0 0
    %1075 = vperm.xlu0 %1074, %v249
    %v1076 = vpop.permute.xlu0 %1075
    %1079 = vset.pattern.permute.xlu0 0
    %1080 = vperm.xlu0 %1079, %v250
    %v1081 = vpop.permute.xlu0 %1080
    %1084 = vset.pattern.permute.xlu0 0
    %1085 = vperm.xlu0 %1084, %v251
    %v1086 = vpop.permute.xlu0 %1085
    %1089 = vset.pattern.permute.xlu0 0
    %1090 = vperm.xlu0 %1089, %v252
    %v1091 = vpop.permute.xlu0 %1090
    %1094 = vset.pattern.permute.xlu0 0
    %1095 = vperm.xlu0 %1094, %v253
    %v1096 = vpop.permute.xlu0 %1095
    %1099 = vset.pattern.permute.xlu0 0
    %1100 = vperm.xlu0 %1099, %v254
    %v1101 = vpop.permute.xlu0 %1100
    %1104 = vset.pattern.permute.xlu0 0
    %1105 = vperm.xlu0 %1104, %v255
    %v1106 = vpop.permute.xlu0 %1105
    %1109 = vset.pattern.permute.xlu0 0
    %1110 = vperm.xlu0 %1109, %v256
    %v1111 = vpop.permute.xlu0 %1110
    %1114 = vset.pattern.permute.xlu0 0
    %1115 = vperm.xlu0 %1114, %v257
    %v1116 = vpop.permute.xlu0 %1115
    %1119 = vset.pattern.permute.xlu0 0
    %1120 = vperm.xlu0 %1119, %v258
    %v1121 = vpop.permute.xlu0 %1120
    %1124 = vset.pattern.permute.xlu0 0
    %1125 = vperm.xlu0 %1124, %v259
    %v1126 = vpop.permute.xlu0 %1125
    %1129 = vset.pattern.permute.xlu0 0
    %1130 = vperm.xlu0 %1129, %v260
    %v1131 = vpop.permute.xlu0 %1130
    %1134 = vset.pattern.permute.xlu0 0
    %1135 = vperm.xlu0 %1134, %v261
    %v1136 = vpop.permute.xlu0 %1135
    %1139 = vset.pattern.permute.xlu0 0
    %1140 = vperm.xlu0 %1139, %v262
    %v1141 = vpop.permute.xlu0 %1140
    %1144 = vset.pattern.permute.xlu0 0
    %1145 = vperm.xlu0 %1144, %v263
    %v1146 = vpop.permute.xlu0 %1145
    %1149 = vset.pattern.permute.xlu0 0
    %1150 = vperm.xlu0 %1149, %v264
    %v1151 = vpop.permute.xlu0 %1150
    %1154 = vset.pattern.permute.xlu0 0
    %1155 = vperm.xlu0 %1154, %v265
    %v1156 = vpop.permute.xlu0 %1155
    %1159 = vset.pattern.permute.xlu0 0
    %1160 = vperm.xlu0 %1159, %v266
    %v1161 = vpop.permute.xlu0 %1160
    %1164 = vset.pattern.permute.xlu0 0
    %1165 = vperm.xlu0 %1164, %v267
    %v1166 = vpop.permute.xlu0 %1165
    %1169 = vset.pattern.permute.xlu0 0
    %1170 = vperm.xlu0 %1169, %v268
    %v1171 = vpop.permute.xlu0 %1170
    %1174 = vset.pattern.permute.xlu0 0
    %1175 = vperm.xlu0 %1174, %v269
    %v1176 = vpop.permute.xlu0 %1175
    %1179 = vset.pattern.permute.xlu0 0
    %1180 = vperm.xlu0 %1179, %v270
    %v1181 = vpop.permute.xlu0 %1180
    %v1183 = vadd.f32 %v895, %v1066
    %v1184 = vadd.f32 %v896, %v1066
    %v1185 = vadd.f32 %v897, %v1066
    %v1186 = vadd.f32 %v898, %v1066
    %v1187 = vadd.f32 %v899, %v1066
    %v1188 = vadd.f32 %v900, %v1066
    %v1189 = vadd.f32 %v901, %v1066
    %v1190 = vadd.f32 %v902, %v1071
    %v1191 = vadd.f32 %v903, %v1071
    %v1192 = vadd.f32 %v904, %v1071
    %v1193 = vadd.f32 %v905, %v1071
    %v1194 = vadd.f32 %v906, %v1071
    %v1195 = vadd.f32 %v907, %v1071
    %v1196 = vadd.f32 %v908, %v1071
    %v1197 = vadd.f32 %v909, %v1076
    %v1198 = vadd.f32 %v910, %v1076
    %v1199 = vadd.f32 %v911, %v1076
    %v1200 = vadd.f32 %v912, %v1076
    %v1201 = vadd.f32 %v913, %v1076
    %v1202 = vadd.f32 %v914, %v1076
    %v1203 = vadd.f32 %v915, %v1076
    %v1204 = vadd.f32 %v916, %v1081
    %v1205 = vadd.f32 %v917, %v1081
    %v1206 = vadd.f32 %v918, %v1081
    %v1207 = vadd.f32 %v919, %v1081
    %v1208 = vadd.f32 %v920, %v1081
    %v1209 = vadd.f32 %v921, %v1081
    %v1210 = vadd.f32 %v922, %v1081
    %v1211 = vadd.f32 %v923, %v1086
    %v1212 = vadd.f32 %v924, %v1086
    %v1213 = vadd.f32 %v925, %v1086
    %v1214 = vadd.f32 %v926, %v1086
    %v1215 = vadd.f32 %v927, %v1086
    %v1216 = vadd.f32 %v928, %v1086
    %v1217 = vadd.f32 %v929, %v1086
    %v1218 = vadd.f32 %v930, %v1091
    %v1219 = vadd.f32 %v931, %v1091
    %v1220 = vadd.f32 %v932, %v1091
    %v1221 = vadd.f32 %v933, %v1091
    %v1222 = vadd.f32 %v934, %v1091
    %v1223 = vadd.f32 %v935, %v1091
    %v1224 = vadd.f32 %v936, %v1091
    %v1225 = vadd.f32 %v937, %v1096
    %v1226 = vadd.f32 %v938, %v1096
    %v1227 = vadd.f32 %v939, %v1096
    %v1228 = vadd.f32 %v940, %v1096
    %v1229 = vadd.f32 %v941, %v1096
    %v1230 = vadd.f32 %v942, %v1096
    %v1231 = vadd.f32 %v943, %v1096
    %v1232 = vadd.f32 %v944, %v1101
    %v1233 = vadd.f32 %v945, %v1101
    %v1234 = vadd.f32 %v946, %v1101
    %v1235 = vadd.f32 %v947, %v1101
    %v1236 = vadd.f32 %v948, %v1101
    %v1237 = vadd.f32 %v949, %v1101
    %v1238 = vadd.f32 %v950, %v1101
    %v1239 = vadd.f32 %v951, %v1106
    %v1240 = vadd.f32 %v952, %v1106
    %v1241 = vadd.f32 %v953, %v1106
    %v1242 = vadd.f32 %v954, %v1106
    %v1243 = vadd.f32 %v955, %v1106
    %v1244 = vadd.f32 %v956, %v1106
    %v1245 = vadd.f32 %v957, %v1106
    %v1246 = vadd.f32 %v958, %v1111
    %v1247 = vadd.f32 %v959, %v1111
    %v1248 = vadd.f32 %v960, %v1111
    %v1249 = vadd.f32 %v961, %v1111
    %v1250 = vadd.f32 %v962, %v1111
    %v1251 = vadd.f32 %v963, %v1111
    %v1252 = vadd.f32 %v964, %v1111
    %v1253 = vadd.f32 %v965, %v1116
    %v1254 = vadd.f32 %v966, %v1116
    %v1255 = vadd.f32 %v967, %v1116
    %v1256 = vadd.f32 %v968, %v1116
    %v1257 = vadd.f32 %v969, %v1116
    %v1258 = vadd.f32 %v970, %v1116
    %v1259 = vadd.f32 %v971, %v1116
    %v1260 = vadd.f32 %v972, %v1121
    %v1261 = vadd.f32 %v973, %v1121
    %v1262 = vadd.f32 %v974, %v1121
    %v1263 = vadd.f32 %v975, %v1121
    %v1264 = vadd.f32 %v976, %v1121
    %v1265 = vadd.f32 %v977, %v1121
    %v1266 = vadd.f32 %v978, %v1121
    %v1267 = vadd.f32 %v979, %v1126
    %v1268 = vadd.f32 %v980, %v1126
    %v1269 = vadd.f32 %v981, %v1126
    %v1270 = vadd.f32 %v982, %v1126
    %v1271 = vadd.f32 %v983, %v1126
    %v1272 = vadd.f32 %v984, %v1126
    %v1273 = vadd.f32 %v985, %v1126
    %v1274 = vadd.f32 %v986, %v1131
    %v1275 = vadd.f32 %v987, %v1131
    %v1276 = vadd.f32 %v988, %v1131
    %v1277 = vadd.f32 %v989, %v1131
    %v1278 = vadd.f32 %v990, %v1131
    %v1279 = vadd.f32 %v991, %v1131
    %v1280 = vadd.f32 %v992, %v1131
    %v1281 = vadd.f32 %v993, %v1136
    %v1282 = vadd.f32 %v994, %v1136
    %v1283 = vadd.f32 %v995, %v1136
    %v1284 = vadd.f32 %v996, %v1136
    %v1285 = vadd.f32 %v997, %v1136
    %v1286 = vadd.f32 %v998, %v1136
    %v1287 = vadd.f32 %v999, %v1136
    %v1288 = vadd.f32 %v1000, %v1141
    %v1289 = vadd.f32 %v1001, %v1141
    %v1290 = vadd.f32 %v1002, %v1141
    %v1291 = vadd.f32 %v1003, %v1141
    %v1292 = vadd.f32 %v1004, %v1141
    %v1293 = vadd.f32 %v1005, %v1141
    %v1294 = vadd.f32 %v1006, %v1141
    %v1295 = vadd.f32 %v1007, %v1146
    %v1296 = vadd.f32 %v1008, %v1146
    %v1297 = vadd.f32 %v1009, %v1146
    %v1298 = vadd.f32 %v1010, %v1146
    %v1299 = vadd.f32 %v1011, %v1146
    %v1300 = vadd.f32 %v1012, %v1146
    %v1301 = vadd.f32 %v1013, %v1146
    %v1302 = vadd.f32 %v1014, %v1151
    %v1303 = vadd.f32 %v1015, %v1151
    %v1304 = vadd.f32 %v1016, %v1151
    %v1305 = vadd.f32 %v1017, %v1151
    %v1306 = vadd.f32 %v1018, %v1151
    %v1307 = vadd.f32 %v1019, %v1151
    %v1308 = vadd.f32 %v1020, %v1151
    %v1309 = vadd.f32 %v1021, %v1156
    %v1310 = vadd.f32 %v1022, %v1156
    %v1311 = vadd.f32 %v1023, %v1156
    %v1312 = vadd.f32 %v1024, %v1156
    %v1313 = vadd.f32 %v1025, %v1156
    %v1314 = vadd.f32 %v1026, %v1156
    %v1315 = vadd.f32 %v1027, %v1156
    %v1316 = vadd.f32 %v1028, %v1161
    %v1317 = vadd.f32 %v1029, %v1161
    %v1318 = vadd.f32 %v1030, %v1161
    %v1319 = vadd.f32 %v1031, %v1161
    %v1320 = vadd.f32 %v1032, %v1161
    %v1321 = vadd.f32 %v1033, %v1161
    %v1322 = vadd.f32 %v1034, %v1161
    %v1323 = vadd.f32 %v1035, %v1166
    %v1324 = vadd.f32 %v1036, %v1166
    %v1325 = vadd.f32 %v1037, %v1166
    %v1326 = vadd.f32 %v1038, %v1166
    %v1327 = vadd.f32 %v1039, %v1166
    %v1328 = vadd.f32 %v1040, %v1166
    %v1329 = vadd.f32 %v1041, %v1166
    %v1330 = vadd.f32 %v1042, %v1171
    %v1331 = vadd.f32 %v1043, %v1171
    %v1332 = vadd.f32 %v1044, %v1171
    %v1333 = vadd.f32 %v1045, %v1171
    %v1334 = vadd.f32 %v1046, %v1171
    %v1335 = vadd.f32 %v1047, %v1171
    %v1336 = vadd.f32 %v1048, %v1171
    %v1337 = vadd.f32 %v1049, %v1176
    %v1338 = vadd.f32 %v1050, %v1176
    %v1339 = vadd.f32 %v1051, %v1176
    %v1340 = vadd.f32 %v1052, %v1176
    %v1341 = vadd.f32 %v1053, %v1176
    %v1342 = vadd.f32 %v1054, %v1176
    %v1343 = vadd.f32 %v1055, %v1176
    %v1344 = vadd.f32 %v1056, %v1181
    %v1345 = vadd.f32 %v1057, %v1181
    %v1346 = vadd.f32 %v1058, %v1181
    %v1347 = vadd.f32 %v1059, %v1181
    %v1348 = vadd.f32 %v1060, %v1181
    %v1349 = vadd.f32 %v1061, %v1181
    %v1350 = vadd.f32 %v1062, %v1181
    %v1351 = vmax.f32 %v1183, 0.0
    %v1352 = vmax.f32 %v1184, 0.0
    %v1353 = vmax.f32 %v1185, 0.0
    %v1354 = vmax.f32 %v1186, 0.0
    %v1355 = vmax.f32 %v1187, 0.0
    %v1356 = vmax.f32 %v1188, 0.0
    %v1357 = vmax.f32 %v1189, 0.0
    %v1358 = vmax.f32 %v1190, 0.0
    %v1359 = vmax.f32 %v1191, 0.0
    %v1360 = vmax.f32 %v1192, 0.0
    %v1361 = vmax.f32 %v1193, 0.0
    %v1362 = vmax.f32 %v1194, 0.0
    %v1363 = vmax.f32 %v1195, 0.0
    %v1364 = vmax.f32 %v1196, 0.0
    %v1365 = vmax.f32 %v1197, 0.0
    %v1366 = vmax.f32 %v1198, 0.0
    %v1367 = vmax.f32 %v1199, 0.0
    %v1368 = vmax.f32 %v1200, 0.0
    %v1369 = vmax.f32 %v1201, 0.0
    %v1370 = vmax.f32 %v1202, 0.0
    %v1371 = vmax.f32 %v1203, 0.0
    %v1372 = vmax.f32 %v1204, 0.0
    %v1373 = vmax.f32 %v1205, 0.0
    %v1374 = vmax.f32 %v1206, 0.0
    %v1375 = vmax.f32 %v1207, 0.0
    %v1376 = vmax.f32 %v1208, 0.0
    %v1377 = vmax.f32 %v1209, 0.0
    %v1378 = vmax.f32 %v1210, 0.0
    %v1379 = vmax.f32 %v1211, 0.0
    %v1380 = vmax.f32 %v1212, 0.0
    %v1381 = vmax.f32 %v1213, 0.0
    %v1382 = vmax.f32 %v1214, 0.0
    %v1383 = vmax.f32 %v1215, 0.0
    %v1384 = vmax.f32 %v1216, 0.0
    %v1385 = vmax.f32 %v1217, 0.0
    %v1386 = vmax.f32 %v1218, 0.0
    %v1387 = vmax.f32 %v1219, 0.0
    %v1388 = vmax.f32 %v1220, 0.0
    %v1389 = vmax.f32 %v1221, 0.0
    %v1390 = vmax.f32 %v1222, 0.0
    %v1391 = vmax.f32 %v1223, 0.0
    %v1392 = vmax.f32 %v1224, 0.0
    %v1393 = vmax.f32 %v1225, 0.0
    %v1394 = vmax.f32 %v1226, 0.0
    %v1395 = vmax.f32 %v1227, 0.0
    %v1396 = vmax.f32 %v1228, 0.0
    %v1397 = vmax.f32 %v1229, 0.0
    %v1398 = vmax.f32 %v1230, 0.0
    %v1399 = vmax.f32 %v1231, 0.0
    %v1400 = vmax.f32 %v1232, 0.0
    %v1401 = vmax.f32 %v1233, 0.0
    %v1402 = vmax.f32 %v1234, 0.0
    %v1403 = vmax.f32 %v1235, 0.0
    %v1404 = vmax.f32 %v1236, 0.0
    %v1405 = vmax.f32 %v1237, 0.0
    %v1406 = vmax.f32 %v1238, 0.0
    %v1407 = vmax.f32 %v1239, 0.0
    %v1408 = vmax.f32 %v1240, 0.0
    %v1409 = vmax.f32 %v1241, 0.0
    %v1410 = vmax.f32 %v1242, 0.0
    %v1411 = vmax.f32 %v1243, 0.0
    %v1412 = vmax.f32 %v1244, 0.0
    %v1413 = vmax.f32 %v1245, 0.0
    %v1414 = vmax.f32 %v1246, 0.0
    %v1415 = vmax.f32 %v1247, 0.0
    %v1416 = vmax.f32 %v1248, 0.0
    %v1417 = vmax.f32 %v1249, 0.0
    %v1418 = vmax.f32 %v1250, 0.0
    %v1419 = vmax.f32 %v1251, 0.0
    %v1420 = vmax.f32 %v1252, 0.0
    %v1421 = vmax.f32 %v1253, 0.0
    %v1422 = vmax.f32 %v1254, 0.0
    %v1423 = vmax.f32 %v1255, 0.0
    %v1424 = vmax.f32 %v1256, 0.0
    %v1425 = vmax.f32 %v1257, 0.0
    %v1426 = vmax.f32 %v1258, 0.0
    %v1427 = vmax.f32 %v1259, 0.0
    %v1428 = vmax.f32 %v1260, 0.0
    %v1429 = vmax.f32 %v1261, 0.0
    %v1430 = vmax.f32 %v1262, 0.0
    %v1431 = vmax.f32 %v1263, 0.0
    %v1432 = vmax.f32 %v1264, 0.0
    %v1433 = vmax.f32 %v1265, 0.0
    %v1434 = vmax.f32 %v1266, 0.0
    %v1435 = vmax.f32 %v1267, 0.0
    %v1436 = vmax.f32 %v1268, 0.0
    %v1437 = vmax.f32 %v1269, 0.0
    %v1438 = vmax.f32 %v1270, 0.0
    %v1439 = vmax.f32 %v1271, 0.0
    %v1440 = vmax.f32 %v1272, 0.0
    %v1441 = vmax.f32 %v1273, 0.0
    %v1442 = vmax.f32 %v1274, 0.0
    %v1443 = vmax.f32 %v1275, 0.0
    %v1444 = vmax.f32 %v1276, 0.0
    %v1445 = vmax.f32 %v1277, 0.0
    %v1446 = vmax.f32 %v1278, 0.0
    %v1447 = vmax.f32 %v1279, 0.0
    %v1448 = vmax.f32 %v1280, 0.0
    %v1449 = vmax.f32 %v1281, 0.0
    %v1450 = vmax.f32 %v1282, 0.0
    %v1451 = vmax.f32 %v1283, 0.0
    %v1452 = vmax.f32 %v1284, 0.0
    %v1453 = vmax.f32 %v1285, 0.0
    %v1454 = vmax.f32 %v1286, 0.0
    %v1455 = vmax.f32 %v1287, 0.0
    %v1456 = vmax.f32 %v1288, 0.0
    %v1457 = vmax.f32 %v1289, 0.0
    %v1458 = vmax.f32 %v1290, 0.0
    %v1459 = vmax.f32 %v1291, 0.0
    %v1460 = vmax.f32 %v1292, 0.0
    %v1461 = vmax.f32 %v1293, 0.0
    %v1462 = vmax.f32 %v1294, 0.0
    %v1463 = vmax.f32 %v1295, 0.0
    %v1464 = vmax.f32 %v1296, 0.0
    %v1465 = vmax.f32 %v1297, 0.0
    %v1466 = vmax.f32 %v1298, 0.0
    %v1467 = vmax.f32 %v1299, 0.0
    %v1468 = vmax.f32 %v1300, 0.0
    %v1469 = vmax.f32 %v1301, 0.0
    %v1470 = vmax.f32 %v1302, 0.0
    %v1471 = vmax.f32 %v1303, 0.0
    %v1472 = vmax.f32 %v1304, 0.0
    %v1473 = vmax.f32 %v1305, 0.0
    %v1474 = vmax.f32 %v1306, 0.0
    %v1475 = vmax.f32 %v1307, 0.0
    %v1476 = vmax.f32 %v1308, 0.0
    %v1477 = vmax.f32 %v1309, 0.0
    %v1478 = vmax.f32 %v1310, 0.0
    %v1479 = vmax.f32 %v1311, 0.0
    %v1480 = vmax.f32 %v1312, 0.0
    %v1481 = vmax.f32 %v1313, 0.0
    %v1482 = vmax.f32 %v1314, 0.0
    %v1483 = vmax.f32 %v1315, 0.0
    %v1484 = vmax.f32 %v1316, 0.0
    %v1485 = vmax.f32 %v1317, 0.0
    %v1486 = vmax.f32 %v1318, 0.0
    %v1487 = vmax.f32 %v1319, 0.0
    %v1488 = vmax.f32 %v1320, 0.0
    %v1489 = vmax.f32 %v1321, 0.0
    %v1490 = vmax.f32 %v1322, 0.0
    %v1491 = vmax.f32 %v1323, 0.0
    %v1492 = vmax.f32 %v1324, 0.0
    %v1493 = vmax.f32 %v1325, 0.0
    %v1494 = vmax.f32 %v1326, 0.0
    %v1495 = vmax.f32 %v1327, 0.0
    %v1496 = vmax.f32 %v1328, 0.0
    %v1497 = vmax.f32 %v1329, 0.0
    %v1498 = vmax.f32 %v1330, 0.0
    %v1499 = vmax.f32 %v1331, 0.0
    %v1500 = vmax.f32 %v1332, 0.0
    %v1501 = vmax.f32 %v1333, 0.0
    %v1502 = vmax.f32 %v1334, 0.0
    %v1503 = vmax.f32 %v1335, 0.0
    %v1504 = vmax.f32 %v1336, 0.0
    %v1505 = vmax.f32 %v1337, 0.0
    %v1506 = vmax.f32 %v1338, 0.0
    %v1507 = vmax.f32 %v1339, 0.0
    %v1508 = vmax.f32 %v1340, 0.0
    %v1509 = vmax.f32 %v1341, 0.0
    %v1510 = vmax.f32 %v1342, 0.0
    %v1511 = vmax.f32 %v1343, 0.0
    %v1512 = vmax.f32 %v1344, 0.0
    %v1513 = vmax.f32 %v1345, 0.0
    %v1514 = vmax.f32 %v1346, 0.0
    %v1515 = vmax.f32 %v1347, 0.0
    %v1516 = vmax.f32 %v1348, 0.0
    %v1517 = vmax.f32 %v1349, 0.0
    %v1518 = vmax.f32 %v1350, 0.0
    %v1519 = vld [vmem:[%s6] sm:$0xff]
    %v1520 = vld [vmem:[%s6 + $0x8] sm:$0xff]
    %v1521 = vld [vmem:[%s6 + $0x10] sm:$0xff]
    %v1522 = vld [vmem:[%s6 + $0x18] sm:$0xff]
    %v1523 = vld [vmem:[%s6 + $0x20] sm:$0xff]
    %v1524 = vld [vmem:[%s6 + $0x28] sm:$0xff]
    %v1525 = vld [vmem:[%s6 + $0x30] sm:$0xff]
    %v1526 = vld [vmem:[%s6 + $0x38] sm:$0xff]
    %v1527 = vld [vmem:[%s6 + $0x40] sm:$0xff]
    %v1528 = vld [vmem:[%s6 + $0x48] sm:$0xff]
    %v1529 = vld [vmem:[%s6 + $0x50] sm:$0xff]
    %v1530 = vld [vmem:[%s6 + $0x58] sm:$0xff]
    %v1531 = vld [vmem:[%s6 + $0x60] sm:$0xff]
    %v1532 = vld [vmem:[%s6 + $0x68] sm:$0xff]
    %v1533 = vld [vmem:[%s6 + $0x70] sm:$0xff]
    %v1534 = vld [vmem:[%s6 + $0x78] sm:$0xff]
    %v1535 = vld [vmem:[%s6 + $0x80] sm:$0xff]
    %v1536 = vld [vmem:[%s6 + $0x88] sm:$0xff]
    %v1537 = vld [vmem:[%s6 + $0x90] sm:$0xff]
    %v1538 = vld [vmem:[%s6 + $0x98] sm:$0xff]
    %v1539 = vld [vmem:[%s6 + $0xa0] sm:$0xff]
    %v1540 = vld [vmem:[%s6 + $0xa8] sm:$0xff]
    %v1541 = vld [vmem:[%s6 + $0xb0] sm:$0xff]
    %v1542 = vld [vmem:[%s6 + $0xb8] sm:$0xff]
    %v1543 = vld [vmem:[%s6 + $0xc0] sm:$0xff]
    %v1544 = vld [vmem:[%s6 + $0xc8] sm:$0xff]
    %v1545 = vld [vmem:[%s6 + $0xd0] sm:$0xff]
    %v1546 = vld [vmem:[%s6 + $0xd8] sm:$0xff]
    %v1547 = vld [vmem:[%s6 + $0xe0] sm:$0xff]
    %v1548 = vld [vmem:[%s6 + $0xe8] sm:$0xff]
    %v1549 = vld [vmem:[%s6 + $0xf0] sm:$0xff]
    %v1550 = vld [vmem:[%s6 + $0xf8] sm:$0xff]
    %v1551 = vld [vmem:[%s6 + $0x100] sm:$0xff]
    %v1552 = vld [vmem:[%s6 + $0x108] sm:$0xff]
    %v1553 = vld [vmem:[%s6 + $0x110] sm:$0xff]
    %v1554 = vld [vmem:[%s6 + $0x118] sm:$0xff]
    %v1555 = vld [vmem:[%s6 + $0x120] sm:$0xff]
    %v1556 = vld [vmem:[%s6 + $0x128] sm:$0xff]
    %v1557 = vld [vmem:[%s6 + $0x130] sm:$0xff]
    %v1558 = vld [vmem:[%s6 + $0x138] sm:$0xff]
    %v1559 = vld [vmem:[%s6 + $0x140] sm:$0xff]
    %v1560 = vld [vmem:[%s6 + $0x148] sm:$0xff]
    %v1561 = vld [vmem:[%s6 + $0x150] sm:$0xff]
    %v1562 = vld [vmem:[%s6 + $0x158] sm:$0xff]
    %v1563 = vld [vmem:[%s6 + $0x160] sm:$0xff]
    %v1564 = vld [vmem:[%s6 + $0x168] sm:$0xff]
    %v1565 = vld [vmem:[%s6 + $0x170] sm:$0xff]
    %v1566 = vld [vmem:[%s6 + $0x178] sm:$0xff]
    %vm1567 = vcmask 523264
    %v1569 = vsel %vm1567, %v1520, 0
    %v1572 = vsel %vm1567, %v1522, 0
    %v1575 = vsel %vm1567, %v1524, 0
    %v1578 = vsel %vm1567, %v1526, 0
    %v1581 = vsel %vm1567, %v1528, 0
    %v1584 = vsel %vm1567, %v1530, 0
    %v1587 = vsel %vm1567, %v1532, 0
    %v1590 = vsel %vm1567, %v1534, 0
    %v1593 = vsel %vm1567, %v1536, 0
    %v1596 = vsel %vm1567, %v1538, 0
    %v1599 = vsel %vm1567, %v1540, 0
    %v1602 = vsel %vm1567, %v1542, 0
    %v1605 = vsel %vm1567, %v1544, 0
    %v1608 = vsel %vm1567, %v1546, 0
    %v1611 = vsel %vm1567, %v1548, 0
    %v1614 = vsel %vm1567, %v1550, 0
    %v1617 = vsel %vm1567, %v1552, 0
    %v1620 = vsel %vm1567, %v1554, 0
    %v1623 = vsel %vm1567, %v1556, 0
    %v1626 = vsel %vm1567, %v1558, 0
    %v1629 = vsel %vm1567, %v1560, 0
    %v1632 = vsel %vm1567, %v1562, 0
    %v1635 = vsel %vm1567, %v1564, 0
    %v1638 = vsel %vm1567, %v1566, 0
    %1640 = vmatprep.subr.mxu0 %v1352
    %1641 = vmatpush1.msra.mxu0 %v1351
    %1642 = vmatprep.subr.mxu0 %v1359
    %1643 = vmatpush1.msra.mxu0 %v1358
    %1644 = vmatprep.subr.mxu0 %v1366
    %1645 = vmatpush1.msra.mxu0 %v1365
    %1646 = vmatprep.subr.mxu0 %v1373
    %1647 = vmatpush1.msra.mxu0 %v1372
    %1648 = vmatprep.subr.mxu0 %v1380
    %1649 = vmatpush1.msra.mxu0 %v1379
    %1650 = vmatprep.subr.mxu0 %v1387
    %1651 = vmatpush1.msra.mxu0 %v1386
    %1652 = vmatprep.subr.mxu0 %v1394
    %1653 = vmatpush1.msra.mxu0 %v1393
    %1654 = vmatprep.subr.mxu0 %v1401
    %1655 = vmatpush1.msra.mxu0 %v1400
    %1656 = vmatprep.subr.mxu0 %v1408
    %1657 = vmatpush1.msra.mxu0 %v1407
    %1658 = vmatprep.subr.mxu0 %v1415
    %1659 = vmatpush1.msra.mxu0 %v1414
    %1660 = vmatprep.subr.mxu0 %v1422
    %1661 = vmatpush1.msra.mxu0 %v1421
    %1662 = vmatprep.subr.mxu0 %v1429
    %1663 = vmatpush1.msra.mxu0 %v1428
    %1664 = vmatprep.subr.mxu0 %v1436
    %1665 = vmatpush1.msra.mxu0 %v1435
    %1666 = vmatprep.subr.mxu0 %v1443
    %1667 = vmatpush1.msra.mxu0 %v1442
    %1668 = vmatprep.subr.mxu0 %v1450
    %1669 = vmatpush1.msra.mxu0 %v1449
    %1670 = vmatprep.subr.mxu0 %v1457
    %1671 = vmatpush1.msra.mxu0 %v1456
    %1672 = vmatprep.subr.mxu0 %v1464
    %1673 = vmatpush1.msra.mxu0 %v1463
    %1674 = vmatprep.subr.mxu0 %v1471
    %1675 = vmatpush1.msra.mxu0 %v1470
    %1676 = vmatprep.subr.mxu0 %v1478
    %1677 = vmatpush1.msra.mxu0 %v1477
    %1678 = vmatprep.subr.mxu0 %v1485
    %1679 = vmatpush1.msra.mxu0 %v1484
    %1680 = vmatprep.subr.mxu0 %v1492
    %1681 = vmatpush1.msra.mxu0 %v1491
    %1682 = vmatprep.subr.mxu0 %v1499
    %1683 = vmatpush1.msra.mxu0 %v1498
    %1684 = vmatprep.subr.mxu0 %v1506
    %1685 = vmatpush1.msra.mxu0 %v1505
    %1686 = vmatprep.subr.mxu0 %v1513
    %1687 = vmatpush1.msra.mxu0 %v1512
    %1688 = vmatprep.subr.mxu0 0.0
    %1689 = vmatpush1.msra.mxu0 0.0
    %1690 = vmatprep.subr.mxu0 0.0
    %1691 = vmatpush1.msra.mxu0 0.0
    %1692 = vmatprep.subr.mxu0 0.0
    %1693 = vmatpush1.msra.mxu0 0.0
    %1694 = vmatprep.subr.mxu0 0.0
    %1695 = vmatpush1.msra.mxu0 0.0
    %1696 = vmatprep.subr.mxu0 0.0
    %1697 = vmatpush1.msra.mxu0 0.0
    %1698 = vmatprep.subr.mxu0 0.0
    %1699 = vmatpush1.msra.mxu0 0.0
    %1700 = vmatprep.subr.mxu0 0.0
    %1701 = vmatpush1.msra.mxu0 0.0
    %1702 = vmatprep.subr.mxu0 0.0
    %1703 = vmatpush1.msra.mxu0 0.0
    %1704 = vmatprep.mubr.f32.mxu0 %v1569
    %1705 = vmatmul.mubr.f32.gmra.mrb[0].mxu0 %v1519
    %v1706 = vpop.f32.mrb[0].mxu0
    %v1707 = vadd.f32 0.0, %v1706
    %v1708 = vpop.f32.mrb[0].mxu0
    %v1709 = vadd.f32 0.0, %v1708
    %1710 = vmatprep.mubr.f32.mxu0 %v1572
    %1711 = vmatmul.mubr.f32.gmra.mrb[0].mxu0 %v1521
    %v1712 = vpop.f32.mrb[0].mxu0
    %v1713 = vadd.f32 0.0, %v1712
    %v1714 = vpop.f32.mrb[0].mxu0
    %v1715 = vadd.f32 0.0, %v1714
    %1716 = vmatprep.mubr.f32.mxu0 %v1575
    %1717 = vmatmul.mubr.f32.gmra.mrb[0].mxu0 %v1523
    %v1718 = vpop.f32.mrb[0].mxu0
    %v1719 = vadd.f32 0.0, %v1718
    %v1720 = vpop.f32.mrb[0].mxu0
    %v1721 = vadd.f32 0.0, %v1720
    %1722 = vmatprep.mubr.f32.mxu0 %v1578
    %1723 = vmatmul.mubr.f32.gmra.mrb[0].mxu0 %v1525
    %v1724 = vpop.f32.mrb[0].mxu0
    %v1725 = vadd.f32 0.0, %v1724
    %v1726 = vpop.f32.mrb[0].mxu0
    %v1727 = vadd.f32 0.0, %v1726
    %1728 = vmatprep.mubr.f32.mxu0 %v1581
    %1729 = vmatmul.mubr.f32.gmra.mrb[0].mxu0 %v1527
    %v1730 = vpop.f32.mrb[0].mxu0
    %v1731 = vadd.f32 0.0, %v1730
    %v1732 = vpop.f32.mrb[0].mxu0
    %v1733 = vadd.f32 0.0, %v1732
    %1734 = vmatprep.mubr.f32.mxu0 %v1584
    %1735 = vmatmul.mubr.f32.gmra.mrb[0].mxu0 %v1529
    %v1736 = vpop.f32.mrb[0].mxu0
    %v1737 = vadd.f32 0.0, %v1736
    %v1738 = vpop.f32.mrb[0].mxu0
    %v1739 = vadd.f32 0.0, %v1738
    %1740 = vmatprep.mubr.f32.mxu0 %v1587
    %1741 = vmatmul.mubr.f32.gmra.mrb[0].mxu0 %v1531
    %v1742 = vpop.f32.mrb[0].mxu0
    %v1743 = vadd.f32 0.0, %v1742
    %v1744 = vpop.f32.mrb[0].mxu0
    %v1745 = vadd.f32 0.0, %v1744
    %1746 = vmatprep.mubr.f32.mxu0 %v1590
    %1747 = vmatmul.mubr.f32.gmra.mrb[0].mxu0 %v1533
    %v1748 = vpop.f32.mrb[0].mxu0
    %v1749 = vadd.f32 0.0, %v1748
    %v1750 = vpop.f32.mrb[0].mxu0
    %v1751 = vadd.f32 0.0, %v1750
    %1752 = vmatprep.mubr.f32.mxu0 %v1593
    %1753 = vmatmul.mubr.f32.gmra.mrb[0].mxu0 %v1535
    %v1754 = vpop.f32.mrb[0].mxu0
    %v1755 = vadd.f32 0.0, %v1754
    %v1756 = vpop.f32.mrb[0].mxu0
    %v1757 = vadd.f32 0.0, %v1756
    %1758 = vmatprep.mubr.f32.mxu0 %v1596
    %1759 = vmatmul.mubr.f32.gmra.mrb[0].mxu0 %v1537
    %v1760 = vpop.f32.mrb[0].mxu0
    %v1761 = vadd.f32 0.0, %v1760
    %v1762 = vpop.f32.mrb[0].mxu0
    %v1763 = vadd.f32 0.0, %v1762
    %1764 = vmatprep.mubr.f32.mxu0 %v1599
    %1765 = vmatmul.mubr.f32.gmra.mrb[0].mxu0 %v1539
    %v1766 = vpop.f32.mrb[0].mxu0
    %v1767 = vadd.f32 0.0, %v1766
    %v1768 = vpop.f32.mrb[0].mxu0
    %v1769 = vadd.f32 0.0, %v1768
    %1770 = vmatprep.mubr.f32.mxu0 %v1602
    %1771 = vmatmul.mubr.f32.gmra.mrb[0].mxu0 %v1541
    %v1772 = vpop.f32.mrb[0].mxu0
    %v1773 = vadd.f32 0.0, %v1772
    %v1774 = vpop.f32.mrb[0].mxu0
    %v1775 = vadd.f32 0.0, %v1774
    %1776 = vmatprep.mubr.f32.mxu0 %v1605
    %1777 = vmatmul.mubr.f32.gmra.mrb[0].mxu0 %v1543
    %v1778 = vpop.f32.mrb[0].mxu0
    %v1779 = vadd.f32 0.0, %v1778
    %v1780 = vpop.f32.mrb[0].mxu0
    %v1781 = vadd.f32 0.0, %v1780
    %1782 = vmatprep.mubr.f32.mxu0 %v1608
    %1783 = vmatmul.mubr.f32.gmra.mrb[0].mxu0 %v1545
    %v1784 = vpop.f32.mrb[0].mxu0
    %v1785 = vadd.f32 0.0, %v1784
    %v1786 = vpop.f32.mrb[0].mxu0
    %v1787 = vadd.f32 0.0, %v1786
    %1788 = vmatprep.mubr.f32.mxu0 %v1611
    %1789 = vmatmul.mubr.f32.gmra.mrb[0].mxu0 %v1547
    %v1790 = vpop.f32.mrb[0].mxu0
    %v1791 = vadd.f32 0.0, %v1790
    %v1792 = vpop.f32.mrb[0].mxu0
    %v1793 = vadd.f32 0.0, %v1792
    %1794 = vmatprep.mubr.f32.mxu0 %v1614
    %1795 = vmatmul.mubr.f32.gmra.mrb[0].mxu0 %v1549
    %v1796 = vpop.f32.mrb[0].mxu0
    %v1797 = vadd.f32 0.0, %v1796
    %v1798 = vpop.f32.mrb[0].mxu0
    %v1799 = vadd.f32 0.0, %v1798
    %1800 = vmatprep.mubr.f32.mxu0 %v1617
    %1801 = vmatmul.mubr.f32.gmra.mrb[0].mxu0 %v1551
    %v1802 = vpop.f32.mrb[0].mxu0
    %v1803 = vadd.f32 0.0, %v1802
    %v1804 = vpop.f32.mrb[0].mxu0
    %v1805 = vadd.f32 0.0, %v1804
    %1806 = vmatprep.mubr.f32.mxu0 %v1620
    %1807 = vmatmul.mubr.f32.gmra.mrb[0].mxu0 %v1553
    %v1808 = vpop.f32.mrb[0].mxu0
    %v1809 = vadd.f32 0.0, %v1808
    %v1810 = vpop.f32.mrb[0].mxu0
    %v1811 = vadd.f32 0.0, %v1810
    %1812 = vmatprep.mubr.f32.mxu0 %v1623
    %1813 = vmatmul.mubr.f32.gmra.mrb[0].mxu0 %v1555
    %v1814 = vpop.f32.mrb[0].mxu0
    %v1815 = vadd.f32 0.0, %v1814
    %v1816 = vpop.f32.mrb[0].mxu0
    %v1817 = vadd.f32 0.0, %v1816
    %1818 = vmatprep.mubr.f32.mxu0 %v1626
    %1819 = vmatmul.mubr.f32.gmra.mrb[0].mxu0 %v1557
    %v1820 = vpop.f32.mrb[0].mxu0
    %v1821 = vadd.f32 0.0, %v1820
    %v1822 = vpop.f32.mrb[0].mxu0
    %v1823 = vadd.f32 0.0, %v1822
    %1824 = vmatprep.mubr.f32.mxu0 %v1629
    %1825 = vmatmul.mubr.f32.gmra.mrb[0].mxu0 %v1559
    %v1826 = vpop.f32.mrb[0].mxu0
    %v1827 = vadd.f32 0.0, %v1826
    %v1828 = vpop.f32.mrb[0].mxu0
    %v1829 = vadd.f32 0.0, %v1828
    %1830 = vmatprep.mubr.f32.mxu0 %v1632
    %1831 = vmatmul.mubr.f32.gmra.mrb[0].mxu0 %v1561
    %v1832 = vpop.f32.mrb[0].mxu0
    %v1833 = vadd.f32 0.0, %v1832
    %v1834 = vpop.f32.mrb[0].mxu0
    %v1835 = vadd.f32 0.0, %v1834
    %1836 = vmatprep.mubr.f32.mxu0 %v1635
    %1837 = vmatmul.mubr.f32.gmra.mrb[0].mxu0 %v1563
    %v1838 = vpop.f32.mrb[0].mxu0
    %v1839 = vadd.f32 0.0, %v1838
    %v1840 = vpop.f32.mrb[0].mxu0
    %v1841 = vadd.f32 0.0, %v1840
    %1842 = vmatprep.mubr.f32.mxu0 %v1638
    %1843 = vmatmul.mubr.f32.gmra.mrb[0].mxu0 %v1565
    %v1844 = vpop.f32.mrb[0].mxu0
    %v1845 = vadd.f32 0.0, %v1844
    %v1846 = vpop.f32.mrb[0].mxu0
    %v1847 = vadd.f32 0.0, %v1846
    %1848 = vdwg.mxu0
    %1849 = vmatprep.subr.mxu0 %v1354
    %1850 = vmatpush1.msra.mxu0 %v1353
    %1851 = vmatprep.subr.mxu0 %v1361
    %1852 = vmatpush1.msra.mxu0 %v1360
    %1853 = vmatprep.subr.mxu0 %v1368
    %1854 = vmatpush1.msra.mxu0 %v1367
    %1855 = vmatprep.subr.mxu0 %v1375
    %1856 = vmatpush1.msra.mxu0 %v1374
    %1857 = vmatprep.subr.mxu0 %v1382
    %1858 = vmatpush1.msra.mxu0 %v1381
    %1859 = vmatprep.subr.mxu0 %v1389
    %1860 = vmatpush1.msra.mxu0 %v1388
    %1861 = vmatprep.subr.mxu0 %v1396
    %1862 = vmatpush1.msra.mxu0 %v1395
    %1863 = vmatprep.subr.mxu0 %v1403
    %1864 = vmatpush1.msra.mxu0 %v1402
    %1865 = vmatprep.subr.mxu0 %v1410
    %1866 = vmatpush1.msra.mxu0 %v1409
    %1867 = vmatprep.subr.mxu0 %v1417
    %1868 = vmatpush1.msra.mxu0 %v1416
    %1869 = vmatprep.subr.mxu0 %v1424
    %1870 = vmatpush1.msra.mxu0 %v1423
    %1871 = vmatprep.subr.mxu0 %v1431
    %1872 = vmatpush1.msra.mxu0 %v1430
    %1873 = vmatprep.subr.mxu0 %v1438
    %1874 = vmatpush1.msra.mxu0 %v1437
    %1875 = vmatprep.subr.mxu0 %v1445
    %1876 = vmatpush1.msra.mxu0 %v1444
    %1877 = vmatprep.subr.mxu0 %v1452
    %1878 = vmatpush1.msra.mxu0 %v1451
    %1879 = vmatprep.subr.mxu0 %v1459
    %1880 = vmatpush1.msra.mxu0 %v1458
    %1881 = vmatprep.subr.mxu0 %v1466
    %1882 = vmatpush1.msra.mxu0 %v1465
    %1883 = vmatprep.subr.mxu0 %v1473
    %1884 = vmatpush1.msra.mxu0 %v1472
    %1885 = vmatprep.subr.mxu0 %v1480
    %1886 = vmatpush1.msra.mxu0 %v1479
    %1887 = vmatprep.subr.mxu0 %v1487
    %1888 = vmatpush1.msra.mxu0 %v1486
    %1889 = vmatprep.subr.mxu0 %v1494
    %1890 = vmatpush1.msra.mxu0 %v1493
    %1891 = vmatprep.subr.mxu0 %v1501
    %1892 = vmatpush1.msra.mxu0 %v1500
    %1893 = vmatprep.subr.mxu0 %v1508
    %1894 = vmatpush1.msra.mxu0 %v1507
    %1895 = vmatprep.subr.mxu0 %v1515
    %1896 = vmatpush1.msra.mxu0 %v1514
    %1897 = vmatprep.subr.mxu0 0.0
    %1898 = vmatpush1.msra.mxu0 0.0
    %1899 = vmatprep.subr.mxu0 0.0
    %1900 = vmatpush1.msra.mxu0 0.0
    %1901 = vmatprep.subr.mxu0 0.0
    %1902 = vmatpush1.msra.mxu0 0.0
    %1903 = vmatprep.subr.mxu0 0.0
    %1904 = vmatpush1.msra.mxu0 0.0
    %1905 = vmatprep.subr.mxu0 0.0
    %1906 = vmatpush1.msra.mxu0 0.0
    %1907 = vmatprep.subr.mxu0 0.0
    %1908 = vmatpush1.msra.mxu0 0.0
    %1909 = vmatprep.subr.mxu0 0.0
    %1910 = vmatpush1.msra.mxu0 0.0
    %1911 = vmatprep.subr.mxu0 0.0
    %1912 = vmatpush1.msra.mxu0 0.0
    %1913 = vmatprep.mubr.f32.mxu0 %v1569
    %1914 = vmatmul.mubr.f32.gmra.mrb[0].mxu0 %v1519
    %v1915 = vpop.f32.mrb[0].mxu0
    %v1916 = vadd.f32 0.0, %v1915
    %v1917 = vpop.f32.mrb[0].mxu0
    %v1918 = vadd.f32 0.0, %v1917
    %1919 = vmatprep.mubr.f32.mxu0 %v1572
    %1920 = vmatmul.mubr.f32.gmra.mrb[0].mxu0 %v1521
    %v1921 = vpop.f32.mrb[0].mxu0
    %v1922 = vadd.f32 0.0, %v1921
    %v1923 = vpop.f32.mrb[0].mxu0
    %v1924 = vadd.f32 0.0, %v1923
    %1925 = vmatprep.mubr.f32.mxu0 %v1575
    %1926 = vmatmul.mubr.f32.gmra.mrb[0].mxu0 %v1523
    %v1927 = vpop.f32.mrb[0].mxu0
    %v1928 = vadd.f32 0.0, %v1927
    %v1929 = vpop.f32.mrb[0].mxu0
    %v1930 = vadd.f32 0.0, %v1929
    %1931 = vmatprep.mubr.f32.mxu0 %v1578
    %1932 = vmatmul.mubr.f32.gmra.mrb[0].mxu0 %v1525
    %v1933 = vpop.f32.mrb[0].mxu0
    %v1934 = vadd.f32 0.0, %v1933
    %v1935 = vpop.f32.mrb[0].mxu0
    %v1936 = vadd.f32 0.0, %v1935
    %1937 = vmatprep.mubr.f32.mxu0 %v1581
    %1938 = vmatmul.mubr.f32.gmra.mrb[0].mxu0 %v1527
    %v1939 = vpop.f32.mrb[0].mxu0
    %v1940 = vadd.f32 0.0, %v1939
    %v1941 = vpop.f32.mrb[0].mxu0
    %v1942 = vadd.f32 0.0, %v1941
    %1943 = vmatprep.mubr.f32.mxu0 %v1584
    %1944 = vmatmul.mubr.f32.gmra.mrb[0].mxu0 %v1529
    %v1945 = vpop.f32.mrb[0].mxu0
    %v1946 = vadd.f32 0.0, %v1945
    %v1947 = vpop.f32.mrb[0].mxu0
    %v1948 = vadd.f32 0.0, %v1947
    %1949 = vmatprep.mubr.f32.mxu0 %v1587
    %1950 = vmatmul.mubr.f32.gmra.mrb[0].mxu0 %v1531
    %v1951 = vpop.f32.mrb[0].mxu0
    %v1952 = vadd.f32 0.0, %v1951
    %v1953 = vpop.f32.mrb[0].mxu0
    %v1954 = vadd.f32 0.0, %v1953
    %1955 = vmatprep.mubr.f32.mxu0 %v1590
    %1956 = vmatmul.mubr.f32.gmra.mrb[0].mxu0 %v1533
    %v1957 = vpop.f32.mrb[0].mxu0
    %v1958 = vadd.f32 0.0, %v1957
    %v1959 = vpop.f32.mrb[0].mxu0
    %v1960 = vadd.f32 0.0, %v1959
    %1961 = vmatprep.mubr.f32.mxu0 %v1593
    %1962 = vmatmul.mubr.f32.gmra.mrb[0].mxu0 %v1535
    %v1963 = vpop.f32.mrb[0].mxu0
    %v1964 = vadd.f32 0.0, %v1963
    %v1965 = vpop.f32.mrb[0].mxu0
    %v1966 = vadd.f32 0.0, %v1965
    %1967 = vmatprep.mubr.f32.mxu0 %v1596
    %1968 = vmatmul.mubr.f32.gmra.mrb[0].mxu0 %v1537
    %v1969 = vpop.f32.mrb[0].mxu0
    %v1970 = vadd.f32 0.0, %v1969
    %v1971 = vpop.f32.mrb[0].mxu0
    %v1972 = vadd.f32 0.0, %v1971
    %1973 = vmatprep.mubr.f32.mxu0 %v1599
    %1974 = vmatmul.mubr.f32.gmra.mrb[0].mxu0 %v1539
    %v1975 = vpop.f32.mrb[0].mxu0
    %v1976 = vadd.f32 0.0, %v1975
    %v1977 = vpop.f32.mrb[0].mxu0
    %v1978 = vadd.f32 0.0, %v1977
    %1979 = vmatprep.mubr.f32.mxu0 %v1602
    %1980 = vmatmul.mubr.f32.gmra.mrb[0].mxu0 %v1541
    %v1981 = vpop.f32.mrb[0].mxu0
    %v1982 = vadd.f32 0.0, %v1981
    %v1983 = vpop.f32.mrb[0].mxu0
    %v1984 = vadd.f32 0.0, %v1983
    %1985 = vmatprep.mubr.f32.mxu0 %v1605
    %1986 = vmatmul.mubr.f32.gmra.mrb[0].mxu0 %v1543
    %v1987 = vpop.f32.mrb[0].mxu0
    %v1988 = vadd.f32 0.0, %v1987
    %v1989 = vpop.f32.mrb[0].mxu0
    %v1990 = vadd.f32 0.0, %v1989
    %1991 = vmatprep.mubr.f32.mxu0 %v1608
    %1992 = vmatmul.mubr.f32.gmra.mrb[0].mxu0 %v1545
    %v1993 = vpop.f32.mrb[0].mxu0
    %v1994 = vadd.f32 0.0, %v1993
    %v1995 = vpop.f32.mrb[0].mxu0
    %v1996 = vadd.f32 0.0, %v1995
    %1997 = vmatprep.mubr.f32.mxu0 %v1611
    %1998 = vmatmul.mubr.f32.gmra.mrb[0].mxu0 %v1547
    %v1999 = vpop.f32.mrb[0].mxu0
    %v2000 = vadd.f32 0.0, %v1999
    %v2001 = vpop.f32.mrb[0].mxu0
    %v2002 = vadd.f32 0.0, %v2001
    %2003 = vmatprep.mubr.f32.mxu0 %v1614
    %2004 = vmatmul.mubr.f32.gmra.mrb[0].mxu0 %v1549
    %v2005 = vpop.f32.mrb[0].mxu0
    %v2006 = vadd.f32 0.0, %v2005
    %v2007 = vpop.f32.mrb[0].mxu0
    %v2008 = vadd.f32 0.0, %v2007
    %2009 = vmatprep.mubr.f32.mxu0 %v1617
    %2010 = vmatmul.mubr.f32.gmra.mrb[0].mxu0 %v1551
    %v2011 = vpop.f32.mrb[0].mxu0
    %v2012 = vadd.f32 0.0, %v2011
    %v2013 = vpop.f32.mrb[0].mxu0
    %v2014 = vadd.f32 0.0, %v2013
    %2015 = vmatprep.mubr.f32.mxu0 %v1620
    %2016 = vmatmul.mubr.f32.gmra.mrb[0].mxu0 %v1553
    %v2017 = vpop.f32.mrb[0].mxu0
    %v2018 = vadd.f32 0.0, %v2017
    %v2019 = vpop.f32.mrb[0].mxu0
    %v2020 = vadd.f32 0.0, %v2019
    %2021 = vmatprep.mubr.f32.mxu0 %v1623
    %2022 = vmatmul.mubr.f32.gmra.mrb[0].mxu0 %v1555
    %v2023 = vpop.f32.mrb[0].mxu0
    %v2024 = vadd.f32 0.0, %v2023
    %v2025 = vpop.f32.mrb[0].mxu0
    %v2026 = vadd.f32 0.0, %v2025
    %2027 = vmatprep.mubr.f32.mxu0 %v1626
    %2028 = vmatmul.mubr.f32.gmra.mrb[0].mxu0 %v1557
    %v2029 = vpop.f32.mrb[0].mxu0
    %v2030 = vadd.f32 0.0, %v2029
    %v2031 = vpop.f32.mrb[0].mxu0
    %v2032 = vadd.f32 0.0, %v2031
    %2033 = vmatprep.mubr.f32.mxu0 %v1629
    %2034 = vmatmul.mubr.f32.gmra.mrb[0].mxu0 %v1559
    %v2035 = vpop.f32.mrb[0].mxu0
    %v2036 = vadd.f32 0.0, %v2035
    %v2037 = vpop.f32.mrb[0].mxu0
    %v2038 = vadd.f32 0.0, %v2037
    %2039 = vmatprep.mubr.f32.mxu0 %v1632
    %2040 = vmatmul.mubr.f32.gmra.mrb[0].mxu0 %v1561
    %v2041 = vpop.f32.mrb[0].mxu0
    %v2042 = vadd.f32 0.0, %v2041
    %v2043 = vpop.f32.mrb[0].mxu0
    %v2044 = vadd.f32 0.0, %v2043
    %2045 = vmatprep.mubr.f32.mxu0 %v1635
    %2046 = vmatmul.mubr.f32.gmra.mrb[0].mxu0 %v1563
    %v2047 = vpop.f32.mrb[0].mxu0
    %v2048 = vadd.f32 0.0, %v2047
    %v2049 = vpop.f32.mrb[0].mxu0
    %v2050 = vadd.f32 0.0, %v2049
    %2051 = vmatprep.mubr.f32.mxu0 %v1638
    %2052 = vmatmul.mubr.f32.gmra.mrb[0].mxu0 %v1565
    %v2053 = vpop.f32.mrb[0].mxu0
    %v2054 = vadd.f32 0.0, %v2053
    %v2055 = vpop.f32.mrb[0].mxu0
    %v2056 = vadd.f32 0.0, %v2055
    %2057 = vdwg.mxu0
    %2058 = vmatprep.subr.mxu0 %v1356
    %2059 = vmatpush1.msra.mxu0 %v1355
    %2060 = vmatprep.subr.mxu0 %v1363
    %2061 = vmatpush1.msra.mxu0 %v1362
    %2062 = vmatprep.subr.mxu0 %v1370
    %2063 = vmatpush1.msra.mxu0 %v1369
    %2064 = vmatprep.subr.mxu0 %v1377
    %2065 = vmatpush1.msra.mxu0 %v1376
    %2066 = vmatprep.subr.mxu0 %v1384
    %2067 = vmatpush1.msra.mxu0 %v1383
    %2068 = vmatprep.subr.mxu0 %v1391
    %2069 = vmatpush1.msra.mxu0 %v1390
    %2070 = vmatprep.subr.mxu0 %v1398
    %2071 = vmatpush1.msra.mxu0 %v1397
    %2072 = vmatprep.subr.mxu0 %v1405
    %2073 = vmatpush1.msra.mxu0 %v1404
    %2074 = vmatprep.subr.mxu0 %v1412
    %2075 = vmatpush1.msra.mxu0 %v1411
    %2076 = vmatprep.subr.mxu0 %v1419
    %2077 = vmatpush1.msra.mxu0 %v1418
    %2078 = vmatprep.subr.mxu0 %v1426
    %2079 = vmatpush1.msra.mxu0 %v1425
    %2080 = vmatprep.subr.mxu0 %v1433
    %2081 = vmatpush1.msra.mxu0 %v1432
    %2082 = vmatprep.subr.mxu0 %v1440
    %2083 = vmatpush1.msra.mxu0 %v1439
    %2084 = vmatprep.subr.mxu0 %v1447
    %2085 = vmatpush1.msra.mxu0 %v1446
    %2086 = vmatprep.subr.mxu0 %v1454
    %2087 = vmatpush1.msra.mxu0 %v1453
    %2088 = vmatprep.subr.mxu0 %v1461
    %2089 = vmatpush1.msra.mxu0 %v1460
    %2090 = vmatprep.subr.mxu0 %v1468
    %2091 = vmatpush1.msra.mxu0 %v1467
    %2092 = vmatprep.subr.mxu0 %v1475
    %2093 = vmatpush1.msra.mxu0 %v1474
    %2094 = vmatprep.subr.mxu0 %v1482
    %2095 = vmatpush1.msra.mxu0 %v1481
    %2096 = vmatprep.subr.mxu0 %v1489
    %2097 = vmatpush1.msra.mxu0 %v1488
    %2098 = vmatprep.subr.mxu0 %v1496
    %2099 = vmatpush1.msra.mxu0 %v1495
    %2100 = vmatprep.subr.mxu0 %v1503
    %2101 = vmatpush1.msra.mxu0 %v1502
    %2102 = vmatprep.subr.mxu0 %v1510
    %2103 = vmatpush1.msra.mxu0 %v1509
    %2104 = vmatprep.subr.mxu0 %v1517
    %2105 = vmatpush1.msra.mxu0 %v1516
    %2106 = vmatprep.subr.mxu0 0.0
    %2107 = vmatpush1.msra.mxu0 0.0
    %2108 = vmatprep.subr.mxu0 0.0
    %2109 = vmatpush1.msra.mxu0 0.0
    %2110 = vmatprep.subr.mxu0 0.0
    %2111 = vmatpush1.msra.mxu0 0.0
    %2112 = vmatprep.subr.mxu0 0.0
    %2113 = vmatpush1.msra.mxu0 0.0
    %2114 = vmatprep.subr.mxu0 0.0
    %2115 = vmatpush1.msra.mxu0 0.0
    %2116 = vmatprep.subr.mxu0 0.0
    %2117 = vmatpush1.msra.mxu0 0.0
    %2118 = vmatprep.subr.mxu0 0.0
    %2119 = vmatpush1.msra.mxu0 0.0
    %2120 = vmatprep.subr.mxu0 0.0
    %2121 = vmatpush1.msra.mxu0 0.0
    %2122 = vmatprep.mubr.f32.mxu0 %v1569
    %2123 = vmatmul.mubr.f32.gmra.mrb[0].mxu0 %v1519
    %v2124 = vpop.f32.mrb[0].mxu0
    %v2125 = vadd.f32 0.0, %v2124
    %v2126 = vpop.f32.mrb[0].mxu0
    %v2127 = vadd.f32 0.0, %v2126
    %2128 = vmatprep.mubr.f32.mxu0 %v1572
    %2129 = vmatmul.mubr.f32.gmra.mrb[0].mxu0 %v1521
    %v2130 = vpop.f32.mrb[0].mxu0
    %v2131 = vadd.f32 0.0, %v2130
    %v2132 = vpop.f32.mrb[0].mxu0
    %v2133 = vadd.f32 0.0, %v2132
    %2134 = vmatprep.mubr.f32.mxu0 %v1575
    %2135 = vmatmul.mubr.f32.gmra.mrb[0].mxu0 %v1523
    %v2136 = vpop.f32.mrb[0].mxu0
    %v2137 = vadd.f32 0.0, %v2136
    %v2138 = vpop.f32.mrb[0].mxu0
    %v2139 = vadd.f32 0.0, %v2138
    %2140 = vmatprep.mubr.f32.mxu0 %v1578
    %2141 = vmatmul.mubr.f32.gmra.mrb[0].mxu0 %v1525
    %v2142 = vpop.f32.mrb[0].mxu0
    %v2143 = vadd.f32 0.0, %v2142
    %v2144 = vpop.f32.mrb[0].mxu0
    %v2145 = vadd.f32 0.0, %v2144
    %2146 = vmatprep.mubr.f32.mxu0 %v1581
    %2147 = vmatmul.mubr.f32.gmra.mrb[0].mxu0 %v1527
    %v2148 = vpop.f32.mrb[0].mxu0
    %v2149 = vadd.f32 0.0, %v2148
    %v2150 = vpop.f32.mrb[0].mxu0
    %v2151 = vadd.f32 0.0, %v2150
    %2152 = vmatprep.mubr.f32.mxu0 %v1584
    %2153 = vmatmul.mubr.f32.gmra.mrb[0].mxu0 %v1529
    %v2154 = vpop.f32.mrb[0].mxu0
    %v2155 = vadd.f32 0.0, %v2154
    %v2156 = vpop.f32.mrb[0].mxu0
    %v2157 = vadd.f32 0.0, %v2156
    %2158 = vmatprep.mubr.f32.mxu0 %v1587
    %2159 = vmatmul.mubr.f32.gmra.mrb[0].mxu0 %v1531
    %v2160 = vpop.f32.mrb[0].mxu0
    %v2161 = vadd.f32 0.0, %v2160
    %v2162 = vpop.f32.mrb[0].mxu0
    %v2163 = vadd.f32 0.0, %v2162
    %2164 = vmatprep.mubr.f32.mxu0 %v1590
    %2165 = vmatmul.mubr.f32.gmra.mrb[0].mxu0 %v1533
    %v2166 = vpop.f32.mrb[0].mxu0
    %v2167 = vadd.f32 0.0, %v2166
    %v2168 = vpop.f32.mrb[0].mxu0
    %v2169 = vadd.f32 0.0, %v2168
    %2170 = vmatprep.mubr.f32.mxu0 %v1593
    %2171 = vmatmul.mubr.f32.gmra.mrb[0].mxu0 %v1535
    %v2172 = vpop.f32.mrb[0].mxu0
    %v2173 = vadd.f32 0.0, %v2172
    %v2174 = vpop.f32.mrb[0].mxu0
    %v2175 = vadd.f32 0.0, %v2174
    %2176 = vmatprep.mubr.f32.mxu0 %v1596
    %2177 = vmatmul.mubr.f32.gmra.mrb[0].mxu0 %v1537
    %v2178 = vpop.f32.mrb[0].mxu0
    %v2179 = vadd.f32 0.0, %v2178
    %v2180 = vpop.f32.mrb[0].mxu0
    %v2181 = vadd.f32 0.0, %v2180
    %2182 = vmatprep.mubr.f32.mxu0 %v1599
    %2183 = vmatmul.mubr.f32.gmra.mrb[0].mxu0 %v1539
    %v2184 = vpop.f32.mrb[0].mxu0
    %v2185 = vadd.f32 0.0, %v2184
    %v2186 = vpop.f32.mrb[0].mxu0
    %v2187 = vadd.f32 0.0, %v2186
    %2188 = vmatprep.mubr.f32.mxu0 %v1602
    %2189 = vmatmul.mubr.f32.gmra.mrb[0].mxu0 %v1541
    %v2190 = vpop.f32.mrb[0].mxu0
    %v2191 = vadd.f32 0.0, %v2190
    %v2192 = vpop.f32.mrb[0].mxu0
    %v2193 = vadd.f32 0.0, %v2192
    %2194 = vmatprep.mubr.f32.mxu0 %v1605
    %2195 = vmatmul.mubr.f32.gmra.mrb[0].mxu0 %v1543
    %v2196 = vpop.f32.mrb[0].mxu0
    %v2197 = vadd.f32 0.0, %v2196
    %v2198 = vpop.f32.mrb[0].mxu0
    %v2199 = vadd.f32 0.0, %v2198
    %2200 = vmatprep.mubr.f32.mxu0 %v1608
    %2201 = vmatmul.mubr.f32.gmra.mrb[0].mxu0 %v1545
    %v2202 = vpop.f32.mrb[0].mxu0
    %v2203 = vadd.f32 0.0, %v2202
    %v2204 = vpop.f32.mrb[0].mxu0
    %v2205 = vadd.f32 0.0, %v2204
    %2206 = vmatprep.mubr.f32.mxu0 %v1611
    %2207 = vmatmul.mubr.f32.gmra.mrb[0].mxu0 %v1547
    %v2208 = vpop.f32.mrb[0].mxu0
    %v2209 = vadd.f32 0.0, %v2208
    %v2210 = vpop.f32.mrb[0].mxu0
    %v2211 = vadd.f32 0.0, %v2210
    %2212 = vmatprep.mubr.f32.mxu0 %v1614
    %2213 = vmatmul.mubr.f32.gmra.mrb[0].mxu0 %v1549
    %v2214 = vpop.f32.mrb[0].mxu0
    %v2215 = vadd.f32 0.0, %v2214
    %v2216 = vpop.f32.mrb[0].mxu0
    %v2217 = vadd.f32 0.0, %v2216
    %2218 = vmatprep.mubr.f32.mxu0 %v1617
    %2219 = vmatmul.mubr.f32.gmra.mrb[0].mxu0 %v1551
    %v2220 = vpop.f32.mrb[0].mxu0
    %v2221 = vadd.f32 0.0, %v2220
    %v2222 = vpop.f32.mrb[0].mxu0
    %v2223 = vadd.f32 0.0, %v2222
    %2224 = vmatprep.mubr.f32.mxu0 %v1620
    %2225 = vmatmul.mubr.f32.gmra.mrb[0].mxu0 %v1553
    %v2226 = vpop.f32.mrb[0].mxu0
    %v2227 = vadd.f32 0.0, %v2226
    %v2228 = vpop.f32.mrb[0].mxu0
    %v2229 = vadd.f32 0.0, %v2228
    %2230 = vmatprep.mubr.f32.mxu0 %v1623
    %2231 = vmatmul.mubr.f32.gmra.mrb[0].mxu0 %v1555
    %v2232 = vpop.f32.mrb[0].mxu0
    %v2233 = vadd.f32 0.0, %v2232
    %v2234 = vpop.f32.mrb[0].mxu0
    %v2235 = vadd.f32 0.0, %v2234
    %2236 = vmatprep.mubr.f32.mxu0 %v1626
    %2237 = vmatmul.mubr.f32.gmra.mrb[0].mxu0 %v1557
    %v2238 = vpop.f32.mrb[0].mxu0
    %v2239 = vadd.f32 0.0, %v2238
    %v2240 = vpop.f32.mrb[0].mxu0
    %v2241 = vadd.f32 0.0, %v2240
    %2242 = vmatprep.mubr.f32.mxu0 %v1629
    %2243 = vmatmul.mubr.f32.gmra.mrb[0].mxu0 %v1559
    %v2244 = vpop.f32.mrb[0].mxu0
    %v2245 = vadd.f32 0.0, %v2244
    %v2246 = vpop.f32.mrb[0].mxu0
    %v2247 = vadd.f32 0.0, %v2246
    %2248 = vmatprep.mubr.f32.mxu0 %v1632
    %2249 = vmatmul.mubr.f32.gmra.mrb[0].mxu0 %v1561
    %v2250 = vpop.f32.mrb[0].mxu0
    %v2251 = vadd.f32 0.0, %v2250
    %v2252 = vpop.f32.mrb[0].mxu0
    %v2253 = vadd.f32 0.0, %v2252
    %2254 = vmatprep.mubr.f32.mxu0 %v1635
    %2255 = vmatmul.mubr.f32.gmra.mrb[0].mxu0 %v1563
    %v2256 = vpop.f32.mrb[0].mxu0
    %v2257 = vadd.f32 0.0, %v2256
    %v2258 = vpop.f32.mrb[0].mxu0
    %v2259 = vadd.f32 0.0, %v2258
    %2260 = vmatprep.mubr.f32.mxu0 %v1638
    %2261 = vmatmul.mubr.f32.gmra.mrb[0].mxu0 %v1565
    %v2262 = vpop.f32.mrb[0].mxu0
    %v2263 = vadd.f32 0.0, %v2262
    %v2264 = vpop.f32.mrb[0].mxu0
    %v2265 = vadd.f32 0.0, %v2264
    %2266 = vdwg.mxu0
    %2267 = vmatprep.subr.mxu0 0.0
    %2268 = vmatpush1.msra.mxu0 %v1357
    %2269 = vmatprep.subr.mxu0 0.0
    %2270 = vmatpush1.msra.mxu0 %v1364
    %2271 = vmatprep.subr.mxu0 0.0
    %2272 = vmatpush1.msra.mxu0 %v1371
    %2273 = vmatprep.subr.mxu0 0.0
    %2274 = vmatpush1.msra.mxu0 %v1378
    %2275 = vmatprep.subr.mxu0 0.0
    %2276 = vmatpush1.msra.mxu0 %v1385
    %2277 = vmatprep.subr.mxu0 0.0
    %2278 = vmatpush1.msra.mxu0 %v1392
    %2279 = vmatprep.subr.mxu0 0.0
    %2280 = vmatpush1.msra.mxu0 %v1399
    %2281 = vmatprep.subr.mxu0 0.0
    %2282 = vmatpush1.msra.mxu0 %v1406
    %2283 = vmatprep.subr.mxu0 0.0
    %2284 = vmatpush1.msra.mxu0 %v1413
    %2285 = vmatprep.subr.mxu0 0.0
    %2286 = vmatpush1.msra.mxu0 %v1420
    %2287 = vmatprep.subr.mxu0 0.0
    %2288 = vmatpush1.msra.mxu0 %v1427
    %2289 = vmatprep.subr.mxu0 0.0
    %2290 = vmatpush1.msra.mxu0 %v1434
    %2291 = vmatprep.subr.mxu0 0.0
    %2292 = vmatpush1.msra.mxu0 %v1441
    %2293 = vmatprep.subr.mxu0 0.0
    %2294 = vmatpush1.msra.mxu0 %v1448
    %2295 = vmatprep.subr.mxu0 0.0
    %2296 = vmatpush1.msra.mxu0 %v1455
    %2297 = vmatprep.subr.mxu0 0.0
    %2298 = vmatpush1.msra.mxu0 %v1462
    %2299 = vmatprep.subr.mxu0 0.0
    %2300 = vmatpush1.msra.mxu0 %v1469
    %2301 = vmatprep.subr.mxu0 0.0
    %2302 = vmatpush1.msra.mxu0 %v1476
    %2303 = vmatprep.subr.mxu0 0.0
    %2304 = vmatpush1.msra.mxu0 %v1483
    %2305 = vmatprep.subr.mxu0 0.0
    %2306 = vmatpush1.msra.mxu0 %v1490
    %2307 = vmatprep.subr.mxu0 0.0
    %2308 = vmatpush1.msra.mxu0 %v1497
    %2309 = vmatprep.subr.mxu0 0.0
    %2310 = vmatpush1.msra.mxu0 %v1504
    %2311 = vmatprep.subr.mxu0 0.0
    %2312 = vmatpush1.msra.mxu0 %v1511
    %2313 = vmatprep.subr.mxu0 0.0
    %2314 = vmatpush1.msra.mxu0 %v1518
    %2315 = vmatprep.subr.mxu0 0.0
    %2316 = vmatpush1.msra.mxu0 0.0
    %2317 = vmatprep.subr.mxu0 0.0
    %2318 = vmatpush1.msra.mxu0 0.0
    %2319 = vmatprep.subr.mxu0 0.0
    %2320 = vmatpush1.msra.mxu0 0.0
    %2321 = vmatprep.subr.mxu0 0.0
    %2322 = vmatpush1.msra.mxu0 0.0
    %2323 = vmatprep.subr.mxu0 0.0
    %2324 = vmatpush1.msra.mxu0 0.0
    %2325 = vmatprep.subr.mxu0 0.0
    %2326 = vmatpush1.msra.mxu0 0.0
    %2327 = vmatprep.subr.mxu0 0.0
    %2328 = vmatpush1.msra.mxu0 0.0
    %2329 = vmatprep.subr.mxu0 0.0
    %2330 = vmatpush1.msra.mxu0 0.0
    %2331 = vmatprep.mubr.f32.mxu0 %v1569
    %2332 = vmatmul.mubr.f32.gmra.mrb[0].mxu0 %v1519
    %v2333 = vpop.f32.mrb[0].mxu0
    %v2334 = vadd.f32 0.0, %v2333
    %v2335 = vpop.f32.mrb[0].mxu0
    %2336 = vmatprep.mubr.f32.mxu0 %v1572
    %2337 = vmatmul.mubr.f32.gmra.mrb[0].mxu0 %v1521
    %v2338 = vpop.f32.mrb[0].mxu0
    %v2339 = vadd.f32 0.0, %v2338
    %v2340 = vpop.f32.mrb[0].mxu0
    %2341 = vmatprep.mubr.f32.mxu0 %v1575
    %2342 = vmatmul.mubr.f32.gmra.mrb[0].mxu0 %v1523
    %v2343 = vpop.f32.mrb[0].mxu0
    %v2344 = vadd.f32 0.0, %v2343
    %v2345 = vpop.f32.mrb[0].mxu0
    %2346 = vmatprep.mubr.f32.mxu0 %v1578
    %2347 = vmatmul.mubr.f32.gmra.mrb[0].mxu0 %v1525
    %v2348 = vpop.f32.mrb[0].mxu0
    %v2349 = vadd.f32 0.0, %v2348
    %v2350 = vpop.f32.mrb[0].mxu0
    %2351 = vmatprep.mubr.f32.mxu0 %v1581
    %2352 = vmatmul.mubr.f32.gmra.mrb[0].mxu0 %v1527
    %v2353 = vpop.f32.mrb[0].mxu0
    %v2354 = vadd.f32 0.0, %v2353
    %v2355 = vpop.f32.mrb[0].mxu0
    %2356 = vmatprep.mubr.f32.mxu0 %v1584
    %2357 = vmatmul.mubr.f32.gmra.mrb[0].mxu0 %v1529
    %v2358 = vpop.f32.mrb[0].mxu0
    %v2359 = vadd.f32 0.0, %v2358
    %v2360 = vpop.f32.mrb[0].mxu0
    %2361 = vmatprep.mubr.f32.mxu0 %v1587
    %2362 = vmatmul.mubr.f32.gmra.mrb[0].mxu0 %v1531
    %v2363 = vpop.f32.mrb[0].mxu0
    %v2364 = vadd.f32 0.0, %v2363
    %v2365 = vpop.f32.mrb[0].mxu0
    %2366 = vmatprep.mubr.f32.mxu0 %v1590
    %2367 = vmatmul.mubr.f32.gmra.mrb[0].mxu0 %v1533
    %v2368 = vpop.f32.mrb[0].mxu0
    %v2369 = vadd.f32 0.0, %v2368
    %v2370 = vpop.f32.mrb[0].mxu0
    %2371 = vmatprep.mubr.f32.mxu0 %v1593
    %2372 = vmatmul.mubr.f32.gmra.mrb[0].mxu0 %v1535
    %v2373 = vpop.f32.mrb[0].mxu0
    %v2374 = vadd.f32 0.0, %v2373
    %v2375 = vpop.f32.mrb[0].mxu0
    %2376 = vmatprep.mubr.f32.mxu0 %v1596
    %2377 = vmatmul.mubr.f32.gmra.mrb[0].mxu0 %v1537
    %v2378 = vpop.f32.mrb[0].mxu0
    %v2379 = vadd.f32 0.0, %v2378
    %v2380 = vpop.f32.mrb[0].mxu0
    %2381 = vmatprep.mubr.f32.mxu0 %v1599
    %2382 = vmatmul.mubr.f32.gmra.mrb[0].mxu0 %v1539
    %v2383 = vpop.f32.mrb[0].mxu0
    %v2384 = vadd.f32 0.0, %v2383
    %v2385 = vpop.f32.mrb[0].mxu0
    %2386 = vmatprep.mubr.f32.mxu0 %v1602
    %2387 = vmatmul.mubr.f32.gmra.mrb[0].mxu0 %v1541
    %v2388 = vpop.f32.mrb[0].mxu0
    %v2389 = vadd.f32 0.0, %v2388
    %v2390 = vpop.f32.mrb[0].mxu0
    %2391 = vmatprep.mubr.f32.mxu0 %v1605
    %2392 = vmatmul.mubr.f32.gmra.mrb[0].mxu0 %v1543
    %v2393 = vpop.f32.mrb[0].mxu0
    %v2394 = vadd.f32 0.0, %v2393
    %v2395 = vpop.f32.mrb[0].mxu0
    %2396 = vmatprep.mubr.f32.mxu0 %v1608
    %2397 = vmatmul.mubr.f32.gmra.mrb[0].mxu0 %v1545
    %v2398 = vpop.f32.mrb[0].mxu0
    %v2399 = vadd.f32 0.0, %v2398
    %v2400 = vpop.f32.mrb[0].mxu0
    %2401 = vmatprep.mubr.f32.mxu0 %v1611
    %2402 = vmatmul.mubr.f32.gmra.mrb[0].mxu0 %v1547
    %v2403 = vpop.f32.mrb[0].mxu0
    %v2404 = vadd.f32 0.0, %v2403
    %v2405 = vpop.f32.mrb[0].mxu0
    %2406 = vmatprep.mubr.f32.mxu0 %v1614
    %2407 = vmatmul.mubr.f32.gmra.mrb[0].mxu0 %v1549
    %v2408 = vpop.f32.mrb[0].mxu0
    %v2409 = vadd.f32 0.0, %v2408
    %v2410 = vpop.f32.mrb[0].mxu0
    %2411 = vmatprep.mubr.f32.mxu0 %v1617
    %2412 = vmatmul.mubr.f32.gmra.mrb[0].mxu0 %v1551
    %v2413 = vpop.f32.mrb[0].mxu0
    %v2414 = vadd.f32 0.0, %v2413
    %v2415 = vpop.f32.mrb[0].mxu0
    %2416 = vmatprep.mubr.f32.mxu0 %v1620
    %2417 = vmatmul.mubr.f32.gmra.mrb[0].mxu0 %v1553
    %v2418 = vpop.f32.mrb[0].mxu0
    %v2419 = vadd.f32 0.0, %v2418
    %v2420 = vpop.f32.mrb[0].mxu0
    %2421 = vmatprep.mubr.f32.mxu0 %v1623
    %2422 = vmatmul.mubr.f32.gmra.mrb[0].mxu0 %v1555
    %v2423 = vpop.f32.mrb[0].mxu0
    %v2424 = vadd.f32 0.0, %v2423
    %v2425 = vpop.f32.mrb[0].mxu0
    %2426 = vmatprep.mubr.f32.mxu0 %v1626
    %2427 = vmatmul.mubr.f32.gmra.mrb[0].mxu0 %v1557
    %v2428 = vpop.f32.mrb[0].mxu0
    %v2429 = vadd.f32 0.0, %v2428
    %v2430 = vpop.f32.mrb[0].mxu0
    %2431 = vmatprep.mubr.f32.mxu0 %v1629
    %2432 = vmatmul.mubr.f32.gmra.mrb[0].mxu0 %v1559
    %v2433 = vpop.f32.mrb[0].mxu0
    %v2434 = vadd.f32 0.0, %v2433
    %v2435 = vpop.f32.mrb[0].mxu0
    %2436 = vmatprep.mubr.f32.mxu0 %v1632
    %2437 = vmatmul.mubr.f32.gmra.mrb[0].mxu0 %v1561
    %v2438 = vpop.f32.mrb[0].mxu0
    %v2439 = vadd.f32 0.0, %v2438
    %v2440 = vpop.f32.mrb[0].mxu0
    %2441 = vmatprep.mubr.f32.mxu0 %v1635
    %2442 = vmatmul.mubr.f32.gmra.mrb[0].mxu0 %v1563
    %v2443 = vpop.f32.mrb[0].mxu0
    %v2444 = vadd.f32 0.0, %v2443
    %v2445 = vpop.f32.mrb[0].mxu0
    %2446 = vmatprep.mubr.f32.mxu0 %v1638
    %2447 = vmatmul.mubr.f32.gmra.mrb[0].mxu0 %v1565
    %v2448 = vpop.f32.mrb[0].mxu0
    %v2449 = vadd.f32 0.0, %v2448
    %v2450 = vpop.f32.mrb[0].mxu0
    %2451 = vdwg.mxu0
    %2452 = vst [vmem:[#allocation7] sm:$0xff] %v1707
    %2453 = vst [vmem:[#allocation7 + $0x8] sm:$0xff] %v1709
    %2454 = vst [vmem:[#allocation7 + $0x10] sm:$0xff] %v1916
    %2455 = vst [vmem:[#allocation7 + $0x18] sm:$0xff] %v1918
    %2456 = vst [vmem:[#allocation7 + $0x20] sm:$0xff] %v2125
    %2457 = vst [vmem:[#allocation7 + $0x28] sm:$0xff] %v2127
    %vm2458 = vcmask 130048
    %2459 = vst.msk [vmem:[#allocation7 + $0x30] sm:$0xff] %vm2458, %v2334
    %2460 = vst [vmem:[#allocation7 + $0x38] sm:$0xff] %v1713
    %2461 = vst [vmem:[#allocation7 + $0x40] sm:$0xff] %v1715
    %2462 = vst [vmem:[#allocation7 + $0x48] sm:$0xff] %v1922
    %2463 = vst [vmem:[#allocation7 + $0x50] sm:$0xff] %v1924
    %2464 = vst [vmem:[#allocation7 + $0x58] sm:$0xff] %v2131
    %2465 = vst [vmem:[#allocation7 + $0x60] sm:$0xff] %v2133
    %2466 = vst.msk [vmem:[#allocation7 + $0x68] sm:$0xff] %vm2458, %v2339
    %2467 = vst [vmem:[#allocation7 + $0x70] sm:$0xff] %v1719
    %2468 = vst [vmem:[#allocation7 + $0x78] sm:$0xff] %v1721
    %2469 = vst [vmem:[#allocation7 + $0x80] sm:$0xff] %v1928
    %2470 = vst [vmem:[#allocation7 + $0x88] sm:$0xff] %v1930
    %2471 = vst [vmem:[#allocation7 + $0x90] sm:$0xff] %v2137
    %2472 = vst [vmem:[#allocation7 + $0x98] sm:$0xff] %v2139
    %2473 = vst.msk [vmem:[#allocation7 + $0xa0] sm:$0xff] %vm2458, %v2344
    %2474 = vst [vmem:[#allocation7 + $0xa8] sm:$0xff] %v1725
    %2475 = vst [vmem:[#allocation7 + $0xb0] sm:$0xff] %v1727
    %2476 = vst [vmem:[#allocation7 + $0xb8] sm:$0xff] %v1934
    %2477 = vst [vmem:[#allocation7 + $0xc0] sm:$0xff] %v1936
    %2478 = vst [vmem:[#allocation7 + $0xc8] sm:$0xff] %v2143
    %2479 = vst [vmem:[#allocation7 + $0xd0] sm:$0xff] %v2145
    %2480 = vst.msk [vmem:[#allocation7 + $0xd8] sm:$0xff] %vm2458, %v2349
    %2481 = vst [vmem:[#allocation7 + $0xe0] sm:$0xff] %v1731
    %2482 = vst [vmem:[#allocation7 + $0xe8] sm:$0xff] %v1733
    %2483 = vst [vmem:[#allocation7 + $0xf0] sm:$0xff] %v1940
    %2484 = vst [vmem:[#allocation7 + $0xf8] sm:$0xff] %v1942
    %2485 = vst [vmem:[#allocation7 + $0x100] sm:$0xff] %v2149
    %2486 = vst [vmem:[#allocation7 + $0x108] sm:$0xff] %v2151
    %2487 = vst.msk [vmem:[#allocation7 + $0x110] sm:$0xff] %vm2458, %v2354
    %2488 = vst [vmem:[#allocation7 + $0x118] sm:$0xff] %v1737
    %2489 = vst [vmem:[#allocation7 + $0x120] sm:$0xff] %v1739
    %2490 = vst [vmem:[#allocation7 + $0x128] sm:$0xff] %v1946
    %2491 = vst [vmem:[#allocation7 + $0x130] sm:$0xff] %v1948
    %2492 = vst [vmem:[#allocation7 + $0x138] sm:$0xff] %v2155
    %2493 = vst [vmem:[#allocation7 + $0x140] sm:$0xff] %v2157
    %2494 = vst.msk [vmem:[#allocation7 + $0x148] sm:$0xff] %vm2458, %v2359
    %2495 = vst [vmem:[#allocation7 + $0x150] sm:$0xff] %v1743
    %2496 = vst [vmem:[#allocation7 + $0x158] sm:$0xff] %v1745
    %2497 = vst [vmem:[#allocation7 + $0x160] sm:$0xff] %v1952
    %2498 = vst [vmem:[#allocation7 + $0x168] sm:$0xff] %v1954
    %2499 = vst [vmem:[#allocation7 + $0x170] sm:$0xff] %v2161
    %2500 = vst [vmem:[#allocation7 + $0x178] sm:$0xff] %v2163
    %2501 = vst.msk [vmem:[#allocation7 + $0x180] sm:$0xff] %vm2458, %v2364
    %2502 = vst [vmem:[#allocation7 + $0x188] sm:$0xff] %v1749
    %2503 = vst [vmem:[#allocation7 + $0x190] sm:$0xff] %v1751
    %2504 = vst [vmem:[#allocation7 + $0x198] sm:$0xff] %v1958
    %2505 = vst [vmem:[#allocation7 + $0x1a0] sm:$0xff] %v1960
    %2506 = vst [vmem:[#allocation7 + $0x1a8] sm:$0xff] %v2167
    %2507 = vst [vmem:[#allocation7 + $0x1b0] sm:$0xff] %v2169
    %2508 = vst.msk [vmem:[#allocation7 + $0x1b8] sm:$0xff] %vm2458, %v2369
    %2509 = vst [vmem:[#allocation7 + $0x1c0] sm:$0xff] %v1755
    %2510 = vst [vmem:[#allocation7 + $0x1c8] sm:$0xff] %v1757
    %2511 = vst [vmem:[#allocation7 + $0x1d0] sm:$0xff] %v1964
    %2512 = vst [vmem:[#allocation7 + $0x1d8] sm:$0xff] %v1966
    %2513 = vst [vmem:[#allocation7 + $0x1e0] sm:$0xff] %v2173
    %2514 = vst [vmem:[#allocation7 + $0x1e8] sm:$0xff] %v2175
    %2515 = vst.msk [vmem:[#allocation7 + $0x1f0] sm:$0xff] %vm2458, %v2374
    %2516 = vst [vmem:[#allocation7 + $0x1f8] sm:$0xff] %v1761
    %2517 = vst [vmem:[#allocation7 + $0x200] sm:$0xff] %v1763
    %2518 = vst [vmem:[#allocation7 + $0x208] sm:$0xff] %v1970
    %2519 = vst [vmem:[#allocation7 + $0x210] sm:$0xff] %v1972
    %2520 = vst [vmem:[#allocation7 + $0x218] sm:$0xff] %v2179
    %2521 = vst [vmem:[#allocation7 + $0x220] sm:$0xff] %v2181
    %2522 = vst.msk [vmem:[#allocation7 + $0x228] sm:$0xff] %vm2458, %v2379
    %2523 = vst [vmem:[#allocation7 + $0x230] sm:$0xff] %v1767
    %2524 = vst [vmem:[#allocation7 + $0x238] sm:$0xff] %v1769
    %2525 = vst [vmem:[#allocation7 + $0x240] sm:$0xff] %v1976
    %2526 = vst [vmem:[#allocation7 + $0x248] sm:$0xff] %v1978
    %2527 = vst [vmem:[#allocation7 + $0x250] sm:$0xff] %v2185
    %2528 = vst [vmem:[#allocation7 + $0x258] sm:$0xff] %v2187
    %2529 = vst.msk [vmem:[#allocation7 + $0x260] sm:$0xff] %vm2458, %v2384
    %2530 = vst [vmem:[#allocation7 + $0x268] sm:$0xff] %v1773
    %2531 = vst [vmem:[#allocation7 + $0x270] sm:$0xff] %v1775
    %2532 = vst [vmem:[#allocation7 + $0x278] sm:$0xff] %v1982
    %2533 = vst [vmem:[#allocation7 + $0x280] sm:$0xff] %v1984
    %2534 = vst [vmem:[#allocation7 + $0x288] sm:$0xff] %v2191
    %2535 = vst [vmem:[#allocation7 + $0x290] sm:$0xff] %v2193
    %2536 = vst.msk [vmem:[#allocation7 + $0x298] sm:$0xff] %vm2458, %v2389
    %2537 = vst [vmem:[#allocation7 + $0x2a0] sm:$0xff] %v1779
    %2538 = vst [vmem:[#allocation7 + $0x2a8] sm:$0xff] %v1781
    %2539 = vst [vmem:[#allocation7 + $0x2b0] sm:$0xff] %v1988
    %2540 = vst [vmem:[#allocation7 + $0x2b8] sm:$0xff] %v1990
    %2541 = vst [vmem:[#allocation7 + $0x2c0] sm:$0xff] %v2197
    %2542 = vst [vmem:[#allocation7 + $0x2c8] sm:$0xff] %v2199
    %2543 = vst.msk [vmem:[#allocation7 + $0x2d0] sm:$0xff] %vm2458, %v2394
    %2544 = vst [vmem:[#allocation7 + $0x2d8] sm:$0xff] %v1785
    %2545 = vst [vmem:[#allocation7 + $0x2e0] sm:$0xff] %v1787
    %2546 = vst [vmem:[#allocation7 + $0x2e8] sm:$0xff] %v1994
    %2547 = vst [vmem:[#allocation7 + $0x2f0] sm:$0xff] %v1996
    %2548 = vst [vmem:[#allocation7 + $0x2f8] sm:$0xff] %v2203
    %2549 = vst [vmem:[#allocation7 + $0x300] sm:$0xff] %v2205
    %2550 = vst.msk [vmem:[#allocation7 + $0x308] sm:$0xff] %vm2458, %v2399
    %2551 = vst [vmem:[#allocation7 + $0x310] sm:$0xff] %v1791
    %2552 = vst [vmem:[#allocation7 + $0x318] sm:$0xff] %v1793
    %2553 = vst [vmem:[#allocation7 + $0x320] sm:$0xff] %v2000
    %2554 = vst [vmem:[#allocation7 + $0x328] sm:$0xff] %v2002
    %2555 = vst [vmem:[#allocation7 + $0x330] sm:$0xff] %v2209
    %2556 = vst [vmem:[#allocation7 + $0x338] sm:$0xff] %v2211
    %2557 = vst.msk [vmem:[#allocation7 + $0x340] sm:$0xff] %vm2458, %v2404
    %2558 = vst [vmem:[#allocation7 + $0x348] sm:$0xff] %v1797
    %2559 = vst [vmem:[#allocation7 + $0x350] sm:$0xff] %v1799
    %2560 = vst [vmem:[#allocation7 + $0x358] sm:$0xff] %v2006
    %2561 = vst [vmem:[#allocation7 + $0x360] sm:$0xff] %v2008
    %2562 = vst [vmem:[#allocation7 + $0x368] sm:$0xff] %v2215
    %2563 = vst [vmem:[#allocation7 + $0x370] sm:$0xff] %v2217
    %2564 = vst.msk [vmem:[#allocation7 + $0x378] sm:$0xff] %vm2458, %v2409
    %2565 = vst [vmem:[#allocation7 + $0x380] sm:$0xff] %v1803
    %2566 = vst [vmem:[#allocation7 + $0x388] sm:$0xff] %v1805
    %2567 = vst [vmem:[#allocation7 + $0x390] sm:$0xff] %v2012
    %2568 = vst [vmem:[#allocation7 + $0x398] sm:$0xff] %v2014
    %2569 = vst [vmem:[#allocation7 + $0x3a0] sm:$0xff] %v2221
    %2570 = vst [vmem:[#allocation7 + $0x3a8] sm:$0xff] %v2223
    %2571 = vst.msk [vmem:[#allocation7 + $0x3b0] sm:$0xff] %vm2458, %v2414
    %2572 = vst [vmem:[#allocation7 + $0x3b8] sm:$0xff] %v1809
    %2573 = vst [vmem:[#allocation7 + $0x3c0] sm:$0xff] %v1811
    %2574 = vst [vmem:[#allocation7 + $0x3c8] sm:$0xff] %v2018
    %2575 = vst [vmem:[#allocation7 + $0x3d0] sm:$0xff] %v2020
    %2576 = vst [vmem:[#allocation7 + $0x3d8] sm:$0xff] %v2227
    %2577 = vst [vmem:[#allocation7 + $0x3e0] sm:$0xff] %v2229
    %2578 = vst.msk [vmem:[#allocation7 + $0x3e8] sm:$0xff] %vm2458, %v2419
    %2579 = vst [vmem:[#allocation7 + $0x3f0] sm:$0xff] %v1815
    %2580 = vst [vmem:[#allocation7 + $0x3f8] sm:$0xff] %v1817
    %2581 = vst [vmem:[#allocation7 + $0x400] sm:$0xff] %v2024
    %2582 = vst [vmem:[#allocation7 + $0x408] sm:$0xff] %v2026
    %2583 = vst [vmem:[#allocation7 + $0x410] sm:$0xff] %v2233
    %2584 = vst [vmem:[#allocation7 + $0x418] sm:$0xff] %v2235
    %2585 = vst.msk [vmem:[#allocation7 + $0x420] sm:$0xff] %vm2458, %v2424
    %2586 = vst [vmem:[#allocation7 + $0x428] sm:$0xff] %v1821
    %2587 = vst [vmem:[#allocation7 + $0x430] sm:$0xff] %v1823
    %2588 = vst [vmem:[#allocation7 + $0x438] sm:$0xff] %v2030
    %2589 = vst [vmem:[#allocation7 + $0x440] sm:$0xff] %v2032
    %2590 = vst [vmem:[#allocation7 + $0x448] sm:$0xff] %v2239
    %2591 = vst [vmem:[#allocation7 + $0x450] sm:$0xff] %v2241
    %2592 = vst.msk [vmem:[#allocation7 + $0x458] sm:$0xff] %vm2458, %v2429
    %2593 = vst [vmem:[#allocation7 + $0x460] sm:$0xff] %v1827
    %2594 = vst [vmem:[#allocation7 + $0x468] sm:$0xff] %v1829
    %2595 = vst [vmem:[#allocation7 + $0x470] sm:$0xff] %v2036
    %2596 = vst [vmem:[#allocation7 + $0x478] sm:$0xff] %v2038
    %2597 = vst [vmem:[#allocation7 + $0x480] sm:$0xff] %v2245
    %2598 = vst [vmem:[#allocation7 + $0x488] sm:$0xff] %v2247
    %2599 = vst.msk [vmem:[#allocation7 + $0x490] sm:$0xff] %vm2458, %v2434
    %2600 = vst [vmem:[#allocation7 + $0x498] sm:$0xff] %v1833
    %2601 = vst [vmem:[#allocation7 + $0x4a0] sm:$0xff] %v1835
    %2602 = vst [vmem:[#allocation7 + $0x4a8] sm:$0xff] %v2042
    %2603 = vst [vmem:[#allocation7 + $0x4b0] sm:$0xff] %v2044
    %2604 = vst [vmem:[#allocation7 + $0x4b8] sm:$0xff] %v2251
    %2605 = vst [vmem:[#allocation7 + $0x4c0] sm:$0xff] %v2253
    %2606 = vst.msk [vmem:[#allocation7 + $0x4c8] sm:$0xff] %vm2458, %v2439
    %2607 = vst [vmem:[#allocation7 + $0x4d0] sm:$0xff] %v1839
    %2608 = vst [vmem:[#allocation7 + $0x4d8] sm:$0xff] %v1841
    %2609 = vst [vmem:[#allocation7 + $0x4e0] sm:$0xff] %v2048
    %2610 = vst [vmem:[#allocation7 + $0x4e8] sm:$0xff] %v2050
    %2611 = vst [vmem:[#allocation7 + $0x4f0] sm:$0xff] %v2257
    %2612 = vst [vmem:[#allocation7 + $0x4f8] sm:$0xff] %v2259
    %2613 = vst.msk [vmem:[#allocation7 + $0x500] sm:$0xff] %vm2458, %v2444
    %2614 = vst [vmem:[#allocation7 + $0x508] sm:$0xff] %v1845
    %2615 = vst [vmem:[#allocation7 + $0x510] sm:$0xff] %v1847
    %2616 = vst [vmem:[#allocation7 + $0x518] sm:$0xff] %v2054
    %2617 = vst [vmem:[#allocation7 + $0x520] sm:$0xff] %v2056
    %2618 = vst [vmem:[#allocation7 + $0x528] sm:$0xff] %v2263
    %2619 = vst [vmem:[#allocation7 + $0x530] sm:$0xff] %v2265
    %2620 = vst.msk [vmem:[#allocation7 + $0x538] sm:$0xff] %vm2458, %v2449
    // Predicated region
    $region38: #{tpu_custom_call.1} parent=1 // pred_check
      _
    $region39: #{tpu_custom_call.1} parent=1 // pred_check_branch
      %2622 = sbr.rel (0) target = $region41
    $region40: #{tpu_custom_call.1} parent=1 // pred_region
      %s2624 = ssub.s32 21504, 21504
      %2625 = vsyncadd [#allocation4], %s2624
      %s2626 = sshll.u32 [#allocation7], 4
      %s2627 = int_to_ptr.vmem [resolvable:$true] %s2626
      %2632 = dma.vmem_to_hbm [thread:$0]  %s2627, 21504, %s7, [#allocation4], 896, 896, 56
    $region41: #{tpu_custom_call.1} parent=1 // pred_fallthru
      _
    // Predicated region
    $region42: #{tpu_custom_call.1} parent=1 // pred_check
      _
    $region43: #{tpu_custom_call.1} parent=1 // pred_check_branch
      %2634 = sbr.rel (0) target = $region45
    $region44: #{tpu_custom_call.1} parent=1 // pred_region
      %2635 = dma.done [#allocation4], 21504
    $region45: #{tpu_custom_call.1} parent=1 // pred_fallthru
      _
    %2636 = vsyncpa [#allocation3], 1
    %2637 = vsyncpa [#allocation6], 1
    %2638 = vsyncpa [#allocation4], 1

</llo_original>
